<compile_context>
chip_gen: v6e
topology: v6e:2x2x1
jax: 0.10.0
libtpu: 0.0.40
codegen_flags: <defaults>
</compile_context>

<pallas_src>
import numpy as np

import jax
import jax.numpy as jnp
from jax.experimental import pallas as pl
from jax.experimental.pallas import tpu as pltpu

LANES = 128  # lane width / padded channel dimension


# ----------------------------------------------------------------------------
# Fused kernel: conv1+BN+ReLU -> conv2+BN -> conv3(1x1)+ReLU -> conv4(1x1)
# One grid step == one batch element.  All matmuls are (M, 128) x (128, 128)
# (plus tiny (M2, M1) selection matmuls), all f32 accumulation on the MXU.
# ----------------------------------------------------------------------------
def _conv_embed_kernel(x_ref, s_ref, w1_ref, w2_ref, w3_ref, w4_ref,
                       sb1_ref, sb2_ref, b3_ref, b4_ref, o_ref):
    f32 = jnp.float32
    bf16 = jnp.bfloat16
    cp = w1_ref.shape[1]          # padded channel width (128)
    taps = s_ref.shape[0]         # 9
    m2 = s_ref.shape[1]           # ho2*wo2

    # ---- layer 1: 3x3 stride-2 conv (im2col rows precomputed) + folded BN + ReLU
    x = x_ref[0]                                                   # (M1, CP) bf16
    acc1 = jnp.dot(x, w1_ref[...], preferred_element_type=f32)     # (M1, CP) f32
    y1 = acc1 * sb1_ref[0:1, :] + sb1_ref[1:2, :]
    y1 = jnp.maximum(y1, 0.0).astype(bf16)                         # (M1, CP) bf16

    # ---- layer 2: 3x3 stride-2 conv as 9 taps of (select @ y1) @ W2[tap] + folded BN
    acc2 = jnp.zeros((m2, cp), f32)
    for t in range(taps):
        gathered = jnp.dot(s_ref[t], y1,
                           preferred_element_type=f32).astype(bf16)   # (M2, CP)
        acc2 = acc2 + jnp.dot(gathered, w2_ref[t],
                              preferred_element_type=f32)
    y2 = (acc2 * sb2_ref[0:1, :] + sb2_ref[1:2, :]).astype(bf16)       # BN, no ReLU

    # ---- layer 3: 1x1 conv + bias + ReLU
    y3 = jnp.dot(y2, w3_ref[...], preferred_element_type=f32) + b3_ref[...]
    y3 = jnp.maximum(y3, 0.0).astype(bf16)

    # ---- layer 4: 1x1 conv + bias
    y4 = jnp.dot(y3, w4_ref[...], preferred_element_type=f32) + b4_ref[...]

    o_ref[0] = y4.astype(o_ref.dtype)


# ----------------------------------------------------------------------------
# Wrapper-side glue (all tiny, one-time XLA ops)
# ----------------------------------------------------------------------------
def _pad_last(a, target):
    cfg = [(0, 0)] * (a.ndim - 1) + [(0, target - a.shape[-1])]
    return jnp.pad(a, cfg)


def fold_bn(gamma, beta, mean, var, conv_bias, eps=1e-5):
    scale = gamma / jnp.sqrt(var + eps)
    bias = beta + scale * (conv_bias - mean)
    return scale, bias


def _make_tap_select(h_in, w_in, h_out, w_out, stride, pad):
    """S[t, m, j] = 1 iff output position m reads input position j for tap t."""
    S = np.zeros((9, h_out * w_out, h_in * w_in), np.float32)
    for dy in range(3):
        for dx in range(3):
            t = dy * 3 + dx
            for oy in range(h_out):
                for ox in range(w_out):
                    iy = stride * oy + dy - pad
                    ix = stride * ox + dx - pad
                    if 0 <= iy < h_in and 0 <= ix < w_in:
                        S[t, oy * w_out + ox, iy * w_in + ix] = 1.0
    return S


@jax.jit
def conv_embedding_forward(params, x_nchw):
    p = params
    B, cin, H, W = x_nchw.shape
    cmid = p["w1"].shape[0]
    cout = p["w2"].shape[0]
    ho1, wo1 = (H + 2 - 3) // 2 + 1, (W + 2 - 3) // 2 + 1
    ho2, wo2 = (ho1 + 2 - 3) // 2 + 1, (wo1 + 2 - 3) // 2 + 1
    CP = LANES
    M1, M2 = ho1 * wo1, ho2 * wo2

    # NCHW -> NHWC, spatial pad, im2col for the FIRST conv only (Cin=4 -> K=36).
    x = jnp.transpose(x_nchw, (0, 2, 3, 1))
    xp = jnp.pad(x, ((0, 0), (1, 1), (1, 1), (0, 0)))
    pieces = [xp[:, dy:dy + 2 * ho1:2, dx:dx + 2 * wo1:2, :]
              for dy in range(3) for dx in range(3)]
    patches = jnp.concatenate(pieces, axis=-1)                 # (B, ho1, wo1, 9*cin)
    x1 = _pad_last(patches.reshape(B, M1, 9 * cin), CP).astype(jnp.bfloat16)

    # 0/1 tap-selection matrices for the in-kernel second 3x3/s2 conv.
    S = jnp.asarray(_make_tap_select(ho1, wo1, ho2, wo2, 2, 1), jnp.bfloat16)

    # Weights in (kh, kw, cin, cout) matmul layout, channel dims padded to 128.
    w1_mat = jnp.transpose(p["w1"], (2, 3, 1, 0)).reshape(9 * cin, cmid)
    w1_mat = jnp.pad(w1_mat, ((0, CP - 9 * cin), (0, CP - cmid))).astype(jnp.bfloat16)
    w2_taps = jnp.transpose(p["w2"], (2, 3, 1, 0)).reshape(9, cmid, cout)
    w2_taps = jnp.pad(w2_taps,
                      ((0, 0), (0, CP - cmid), (0, CP - cout))).astype(jnp.bfloat16)
    w3_mat = jnp.pad(jnp.transpose(p["w3"][:, :, 0, 0]),
                     ((0, CP - cout), (0, CP - cout))).astype(jnp.bfloat16)
    w4_mat = jnp.pad(jnp.transpose(p["w4"][:, :, 0, 0]),
                     ((0, CP - cout), (0, CP - cout))).astype(jnp.bfloat16)

    # Folded BatchNorm (inference mode) scale/bias, padded with zeros.
    s1, b1 = fold_bn(p["bn1_gamma"], p["bn1_beta"], p["bn1_mean"], p["bn1_var"], p["b1"])
    s2, b2 = fold_bn(p["bn2_gamma"], p["bn2_beta"], p["bn2_mean"], p["bn2_var"], p["b2"])
    sb1 = jnp.stack([_pad_last(s1, CP), _pad_last(b1, CP)]).astype(jnp.float32)
    sb2 = jnp.stack([_pad_last(s2, CP), _pad_last(b2, CP)]).astype(jnp.float32)
    b3 = _pad_last(p["b3"], CP).reshape(1, CP).astype(jnp.float32)
    b4 = _pad_last(p["b4"], CP).reshape(1, CP).astype(jnp.float32)

    inputs = (x1, S, w1_mat, w2_taps, w3_mat, w4_mat, sb1, sb2, b3, b4)
    flops = 2 * B * (M1 * CP * CP + 9 * (M2 * M1 * CP + M2 * CP * CP)
                     + 2 * M2 * CP * CP)
    bytes_accessed = int(sum(a.size * a.dtype.itemsize for a in inputs)
                         + B * M2 * CP * 4)

    out = pl.pallas_call(
        _conv_embed_kernel,
        out_shape=jax.ShapeDtypeStruct((B, M2, CP), jnp.float32),
        grid=(B,),
        in_specs=[
            pl.BlockSpec((1, M1, CP), lambda b: (b, 0, 0)),   # im2col rows of conv1
            pl.BlockSpec((9, M2, M1), lambda b: (0, 0, 0)),   # tap-selection matrices
            pl.BlockSpec((CP, CP), lambda b: (0, 0)),         # W1
            pl.BlockSpec((9, CP, CP), lambda b: (0, 0, 0)),   # W2 taps
            pl.BlockSpec((CP, CP), lambda b: (0, 0)),         # W3
            pl.BlockSpec((CP, CP), lambda b: (0, 0)),         # W4
            pl.BlockSpec((2, CP), lambda b: (0, 0)),          # BN1 scale/bias
            pl.BlockSpec((2, CP), lambda b: (0, 0)),          # BN2 scale/bias
            pl.BlockSpec((1, CP), lambda b: (0, 0)),          # bias3
            pl.BlockSpec((1, CP), lambda b: (0, 0)),          # bias4
        ],
        out_specs=pl.BlockSpec((1, M2, CP), lambda b: (b, 0, 0)),
        compiler_params=pltpu.CompilerParams(
            dimension_semantics=("parallel",)),
        cost_estimate=pl.CostEstimate(flops=flops, transcendentals=0,
                                      bytes_accessed=bytes_accessed),
    )(*inputs)

    y = out[:, :, :cout].reshape(B, ho2, wo2, cout)
    return jnp.transpose(y, (0, 3, 1, 2))                     # NHWC -> NCHW


# ----------------------------------------------------------------------------
# Deterministic parameter initialization (inference-mode BN running stats)
# ----------------------------------------------------------------------------
def init_params(key, in_channels, out_channels):
    cmid = out_channels // 2
    ks = jax.random.split(key, 12)
    p = {}
    p["w1"] = 0.1 * jax.random.normal(ks[0], (cmid, in_channels, 3, 3), jnp.float32)
    p["b1"] = 0.1 * jax.random.normal(ks[1], (cmid,), jnp.float32)
    p["bn1_gamma"] = 1.0 + 0.1 * jax.random.normal(ks[2], (cmid,), jnp.float32)
    p["bn1_beta"] = 0.1 * jax.random.normal(ks[3], (cmid,), jnp.float32)
    p["bn1_mean"] = 0.1 * jax.random.normal(ks[4], (cmid,), jnp.float32)
    p["bn1_var"] = jax.random.uniform(ks[5], (cmid,), jnp.float32, 0.5, 1.5)

    p["w2"] = 0.1 * jax.random.normal(ks[6], (out_channels, cmid, 3, 3), jnp.float32)
    p["b2"] = 0.1 * jax.random.normal(ks[7], (out_channels,), jnp.float32)
    p["bn2_gamma"] = 1.0 + 0.1 * jax.random.normal(ks[8], (out_channels,), jnp.float32)
    p["bn2_beta"] = 0.1 * jax.random.normal(ks[9], (out_channels,), jnp.float32)
    p["bn2_mean"] = 0.1 * jax.random.normal(ks[10], (out_channels,), jnp.float32)
    p["bn2_var"] = jax.random.uniform(ks[11], (out_channels,), jnp.float32, 0.5, 1.5)

    ks2 = jax.random.split(jax.random.fold_in(key, 1), 4)
    p["w3"] = 0.1 * jax.random.normal(ks2[0], (out_channels, out_channels, 1, 1), jnp.float32)
    p["b3"] = 0.1 * jax.random.normal(ks2[1], (out_channels,), jnp.float32)
    p["w4"] = 0.1 * jax.random.normal(ks2[2], (out_channels, out_channels, 1, 1), jnp.float32)
    p["b4"] = 0.1 * jax.random.normal(ks2[3], (out_channels,), jnp.float32)
    return p


if __name__ == "__main__":
    in_channels, out_channels = 4, 32
    batch, spatial = 2, 16

    key = jax.random.PRNGKey(0)
    k_in, k_par = jax.random.split(key)
    x = jax.random.normal(k_in, (batch, in_channels, spatial, spatial), jnp.float32)
    params = init_params(k_par, in_channels, out_channels)

    out = conv_embedding_forward(params, x)
    out = jax.block_until_ready(out)

    assert out.shape == (batch, out_channels, spatial // 4, spatial // 4), out.shape
    assert jnp.all(jnp.isfinite(out))
    print("KERNEL_OK")
</pallas_src>

<mosaic_0001>
module attributes {stable_mosaic.version = 11 : i64} {
  func.func @_conv_embed_kernel(%arg0: i32, %arg1: memref<1x64x128xbf16, #tpu.memory_space<vmem>>, %arg2: memref<9x16x64xbf16, #tpu.memory_space<vmem>>, %arg3: memref<128x128xbf16, #tpu.memory_space<vmem>>, %arg4: memref<9x128x128xbf16, #tpu.memory_space<vmem>>, %arg5: memref<128x128xbf16, #tpu.memory_space<vmem>>, %arg6: memref<128x128xbf16, #tpu.memory_space<vmem>>, %arg7: memref<2x128xf32, #tpu.memory_space<vmem>>, %arg8: memref<2x128xf32, #tpu.memory_space<vmem>>, %arg9: memref<1x128xf32, #tpu.memory_space<vmem>>, %arg10: memref<1x128xf32, #tpu.memory_space<vmem>>, %arg11: memref<1x16x128xf32, #tpu.memory_space<vmem>>) attributes {dimension_semantics = [#tpu.dimension_semantics<parallel>], iteration_bounds = array<i64: 2>, scalar_prefetch = 0 : i64, scratch_operands = 0 : i64, tpu.core_type = #tpu.core_type<tc>, window_params = [{transform_indices = @transform_0, window_bounds = array<i64: 1, 64, 128>}, {pipeline_mode = #tpu.pipeline_mode<synchronous>, transform_indices = @transform_1, window_bounds = array<i64: 9, 16, 64>}, {pipeline_mode = #tpu.pipeline_mode<synchronous>, transform_indices = @transform_2, window_bounds = array<i64: 128, 128>}, {pipeline_mode = #tpu.pipeline_mode<synchronous>, transform_indices = @transform_3, window_bounds = array<i64: 9, 128, 128>}, {pipeline_mode = #tpu.pipeline_mode<synchronous>, transform_indices = @transform_4, window_bounds = array<i64: 128, 128>}, {pipeline_mode = #tpu.pipeline_mode<synchronous>, transform_indices = @transform_5, window_bounds = array<i64: 128, 128>}, {pipeline_mode = #tpu.pipeline_mode<synchronous>, transform_indices = @transform_6, window_bounds = array<i64: 2, 128>}, {pipeline_mode = #tpu.pipeline_mode<synchronous>, transform_indices = @transform_7, window_bounds = array<i64: 2, 128>}, {pipeline_mode = #tpu.pipeline_mode<synchronous>, transform_indices = @transform_8, window_bounds = array<i64: 1, 128>}, {pipeline_mode = #tpu.pipeline_mode<synchronous>, transform_indices = @transform_9, window_bounds = array<i64: 1, 128>}, {transform_indices = @transform_10, window_bounds = array<i64: 1, 16, 128>}]} {
    %c0 = arith.constant 0 : index
    %c0_0 = arith.constant 0 : index
    %c0_1 = arith.constant 0 : index
    %0 = vector.load %arg1[%c0, %c0_0, %c0_1] : memref<1x64x128xbf16, #tpu.memory_space<vmem>>, vector<1x64x128xbf16>
    %1 = vector.shape_cast %0 : vector<1x64x128xbf16> to vector<64x128xbf16>
    %c0_2 = arith.constant 0 : index
    %c0_3 = arith.constant 0 : index
    %2 = vector.load %arg3[%c0_2, %c0_3] : memref<128x128xbf16, #tpu.memory_space<vmem>>, vector<128x128xbf16>
    %cst = arith.constant dense<0.000000e+00> : vector<64x128xf32>
    %3 = tpu.matmul %1, %2, %cst {dimension_numbers = #tpu.dot_dimension_numbers<[1], [0], [0], [1], [0, 0, 1, 1], [], []>} : vector<64x128xbf16>, vector<128x128xbf16>, vector<64x128xf32> -> vector<64x128xf32>
    %c0_4 = arith.constant 0 : index
    %c0_5 = arith.constant 0 : index
    %4 = vector.load %arg7[%c0_4, %c0_5] : memref<2x128xf32, #tpu.memory_space<vmem>>, vector<1x128xf32>
    %5 = vector.broadcast %4 : vector<1x128xf32> to vector<64x128xf32>
    %6 = arith.mulf %3, %5 : vector<64x128xf32>
    %c1 = arith.constant 1 : index
    %c0_6 = arith.constant 0 : index
    %7 = vector.load %arg7[%c1, %c0_6] : memref<2x128xf32, #tpu.memory_space<vmem>>, vector<1x128xf32>
    %8 = vector.broadcast %7 : vector<1x128xf32> to vector<64x128xf32>
    %9 = arith.addf %6, %8 : vector<64x128xf32>
    %cst_7 = arith.constant 0.000000e+00 : f32
    %10 = vector.broadcast %cst_7 : f32 to vector<64x128xf32>
    %11 = arith.maximumf %9, %10 : vector<64x128xf32>
    %12 = arith.truncf %11 : vector<64x128xf32> to vector<64x128xbf16>
    %cst_8 = arith.constant 0.000000e+00 : f32
    %13 = vector.broadcast %cst_8 : f32 to vector<16x128xf32>
    %c0_9 = arith.constant 0 : index
    %c0_10 = arith.constant 0 : index
    %c0_11 = arith.constant 0 : index
    %14 = vector.load %arg2[%c0_9, %c0_10, %c0_11] : memref<9x16x64xbf16, #tpu.memory_space<vmem>>, vector<1x16x64xbf16>
    %15 = vector.shape_cast %14 : vector<1x16x64xbf16> to vector<16x64xbf16>
    %cst_12 = arith.constant dense<0.000000e+00> : vector<16x128xf32>
    %16 = tpu.matmul %15, %12, %cst_12 {dimension_numbers = #tpu.dot_dimension_numbers<[1], [0], [0], [1], [0, 0, 1, 1], [], []>} : vector<16x64xbf16>, vector<64x128xbf16>, vector<16x128xf32> -> vector<16x128xf32>
    %17 = arith.truncf %16 : vector<16x128xf32> to vector<16x128xbf16>
    %c0_13 = arith.constant 0 : index
    %c0_14 = arith.constant 0 : index
    %c0_15 = arith.constant 0 : index
    %18 = vector.load %arg4[%c0_13, %c0_14, %c0_15] : memref<9x128x128xbf16, #tpu.memory_space<vmem>>, vector<1x128x128xbf16>
    %19 = vector.shape_cast %18 : vector<1x128x128xbf16> to vector<128x128xbf16>
    %cst_16 = arith.constant dense<0.000000e+00> : vector<16x128xf32>
    %20 = tpu.matmul %17, %19, %cst_16 {dimension_numbers = #tpu.dot_dimension_numbers<[1], [0], [0], [1], [0, 0, 1, 1], [], []>} : vector<16x128xbf16>, vector<128x128xbf16>, vector<16x128xf32> -> vector<16x128xf32>
    %21 = arith.addf %13, %20 : vector<16x128xf32>
    %c1_17 = arith.constant 1 : index
    %c0_18 = arith.constant 0 : index
    %c0_19 = arith.constant 0 : index
    %22 = vector.load %arg2[%c1_17, %c0_18, %c0_19] : memref<9x16x64xbf16, #tpu.memory_space<vmem>>, vector<1x16x64xbf16>
    %23 = vector.shape_cast %22 : vector<1x16x64xbf16> to vector<16x64xbf16>
    %cst_20 = arith.constant dense<0.000000e+00> : vector<16x128xf32>
    %24 = tpu.matmul %23, %12, %cst_20 {dimension_numbers = #tpu.dot_dimension_numbers<[1], [0], [0], [1], [0, 0, 1, 1], [], []>} : vector<16x64xbf16>, vector<64x128xbf16>, vector<16x128xf32> -> vector<16x128xf32>
    %25 = arith.truncf %24 : vector<16x128xf32> to vector<16x128xbf16>
    %c1_21 = arith.constant 1 : index
    %c0_22 = arith.constant 0 : index
    %c0_23 = arith.constant 0 : index
    %26 = vector.load %arg4[%c1_21, %c0_22, %c0_23] : memref<9x128x128xbf16, #tpu.memory_space<vmem>>, vector<1x128x128xbf16>
    %27 = vector.shape_cast %26 : vector<1x128x128xbf16> to vector<128x128xbf16>
    %cst_24 = arith.constant dense<0.000000e+00> : vector<16x128xf32>
    %28 = tpu.matmul %25, %27, %cst_24 {dimension_numbers = #tpu.dot_dimension_numbers<[1], [0], [0], [1], [0, 0, 1, 1], [], []>} : vector<16x128xbf16>, vector<128x128xbf16>, vector<16x128xf32> -> vector<16x128xf32>
    %29 = arith.addf %21, %28 : vector<16x128xf32>
    %c2 = arith.constant 2 : index
    %c0_25 = arith.constant 0 : index
    %c0_26 = arith.constant 0 : index
    %30 = vector.load %arg2[%c2, %c0_25, %c0_26] : memref<9x16x64xbf16, #tpu.memory_space<vmem>>, vector<1x16x64xbf16>
    %31 = vector.shape_cast %30 : vector<1x16x64xbf16> to vector<16x64xbf16>
    %cst_27 = arith.constant dense<0.000000e+00> : vector<16x128xf32>
    %32 = tpu.matmul %31, %12, %cst_27 {dimension_numbers = #tpu.dot_dimension_numbers<[1], [0], [0], [1], [0, 0, 1, 1], [], []>} : vector<16x64xbf16>, vector<64x128xbf16>, vector<16x128xf32> -> vector<16x128xf32>
    %33 = arith.truncf %32 : vector<16x128xf32> to vector<16x128xbf16>
    %c2_28 = arith.constant 2 : index
    %c0_29 = arith.constant 0 : index
    %c0_30 = arith.constant 0 : index
    %34 = vector.load %arg4[%c2_28, %c0_29, %c0_30] : memref<9x128x128xbf16, #tpu.memory_space<vmem>>, vector<1x128x128xbf16>
    %35 = vector.shape_cast %34 : vector<1x128x128xbf16> to vector<128x128xbf16>
    %cst_31 = arith.constant dense<0.000000e+00> : vector<16x128xf32>
    %36 = tpu.matmul %33, %35, %cst_31 {dimension_numbers = #tpu.dot_dimension_numbers<[1], [0], [0], [1], [0, 0, 1, 1], [], []>} : vector<16x128xbf16>, vector<128x128xbf16>, vector<16x128xf32> -> vector<16x128xf32>
    %37 = arith.addf %29, %36 : vector<16x128xf32>
    %c3 = arith.constant 3 : index
    %c0_32 = arith.constant 0 : index
    %c0_33 = arith.constant 0 : index
    %38 = vector.load %arg2[%c3, %c0_32, %c0_33] : memref<9x16x64xbf16, #tpu.memory_space<vmem>>, vector<1x16x64xbf16>
    %39 = vector.shape_cast %38 : vector<1x16x64xbf16> to vector<16x64xbf16>
    %cst_34 = arith.constant dense<0.000000e+00> : vector<16x128xf32>
    %40 = tpu.matmul %39, %12, %cst_34 {dimension_numbers = #tpu.dot_dimension_numbers<[1], [0], [0], [1], [0, 0, 1, 1], [], []>} : vector<16x64xbf16>, vector<64x128xbf16>, vector<16x128xf32> -> vector<16x128xf32>
    %41 = arith.truncf %40 : vector<16x128xf32> to vector<16x128xbf16>
    %c3_35 = arith.constant 3 : index
    %c0_36 = arith.constant 0 : index
    %c0_37 = arith.constant 0 : index
    %42 = vector.load %arg4[%c3_35, %c0_36, %c0_37] : memref<9x128x128xbf16, #tpu.memory_space<vmem>>, vector<1x128x128xbf16>
    %43 = vector.shape_cast %42 : vector<1x128x128xbf16> to vector<128x128xbf16>
    %cst_38 = arith.constant dense<0.000000e+00> : vector<16x128xf32>
    %44 = tpu.matmul %41, %43, %cst_38 {dimension_numbers = #tpu.dot_dimension_numbers<[1], [0], [0], [1], [0, 0, 1, 1], [], []>} : vector<16x128xbf16>, vector<128x128xbf16>, vector<16x128xf32> -> vector<16x128xf32>
    %45 = arith.addf %37, %44 : vector<16x128xf32>
    %c4 = arith.constant 4 : index
    %c0_39 = arith.constant 0 : index
    %c0_40 = arith.constant 0 : index
    %46 = vector.load %arg2[%c4, %c0_39, %c0_40] : memref<9x16x64xbf16, #tpu.memory_space<vmem>>, vector<1x16x64xbf16>
    %47 = vector.shape_cast %46 : vector<1x16x64xbf16> to vector<16x64xbf16>
    %cst_41 = arith.constant dense<0.000000e+00> : vector<16x128xf32>
    %48 = tpu.matmul %47, %12, %cst_41 {dimension_numbers = #tpu.dot_dimension_numbers<[1], [0], [0], [1], [0, 0, 1, 1], [], []>} : vector<16x64xbf16>, vector<64x128xbf16>, vector<16x128xf32> -> vector<16x128xf32>
    %49 = arith.truncf %48 : vector<16x128xf32> to vector<16x128xbf16>
    %c4_42 = arith.constant 4 : index
    %c0_43 = arith.constant 0 : index
    %c0_44 = arith.constant 0 : index
    %50 = vector.load %arg4[%c4_42, %c0_43, %c0_44] : memref<9x128x128xbf16, #tpu.memory_space<vmem>>, vector<1x128x128xbf16>
    %51 = vector.shape_cast %50 : vector<1x128x128xbf16> to vector<128x128xbf16>
    %cst_45 = arith.constant dense<0.000000e+00> : vector<16x128xf32>
    %52 = tpu.matmul %49, %51, %cst_45 {dimension_numbers = #tpu.dot_dimension_numbers<[1], [0], [0], [1], [0, 0, 1, 1], [], []>} : vector<16x128xbf16>, vector<128x128xbf16>, vector<16x128xf32> -> vector<16x128xf32>
    %53 = arith.addf %45, %52 : vector<16x128xf32>
    %c5 = arith.constant 5 : index
    %c0_46 = arith.constant 0 : index
    %c0_47 = arith.constant 0 : index
    %54 = vector.load %arg2[%c5, %c0_46, %c0_47] : memref<9x16x64xbf16, #tpu.memory_space<vmem>>, vector<1x16x64xbf16>
    %55 = vector.shape_cast %54 : vector<1x16x64xbf16> to vector<16x64xbf16>
    %cst_48 = arith.constant dense<0.000000e+00> : vector<16x128xf32>
    %56 = tpu.matmul %55, %12, %cst_48 {dimension_numbers = #tpu.dot_dimension_numbers<[1], [0], [0], [1], [0, 0, 1, 1], [], []>} : vector<16x64xbf16>, vector<64x128xbf16>, vector<16x128xf32> -> vector<16x128xf32>
    %57 = arith.truncf %56 : vector<16x128xf32> to vector<16x128xbf16>
    %c5_49 = arith.constant 5 : index
    %c0_50 = arith.constant 0 : index
    %c0_51 = arith.constant 0 : index
    %58 = vector.load %arg4[%c5_49, %c0_50, %c0_51] : memref<9x128x128xbf16, #tpu.memory_space<vmem>>, vector<1x128x128xbf16>
    %59 = vector.shape_cast %58 : vector<1x128x128xbf16> to vector<128x128xbf16>
    %cst_52 = arith.constant dense<0.000000e+00> : vector<16x128xf32>
    %60 = tpu.matmul %57, %59, %cst_52 {dimension_numbers = #tpu.dot_dimension_numbers<[1], [0], [0], [1], [0, 0, 1, 1], [], []>} : vector<16x128xbf16>, vector<128x128xbf16>, vector<16x128xf32> -> vector<16x128xf32>
    %61 = arith.addf %53, %60 : vector<16x128xf32>
    %c6 = arith.constant 6 : index
    %c0_53 = arith.constant 0 : index
    %c0_54 = arith.constant 0 : index
    %62 = vector.load %arg2[%c6, %c0_53, %c0_54] : memref<9x16x64xbf16, #tpu.memory_space<vmem>>, vector<1x16x64xbf16>
    %63 = vector.shape_cast %62 : vector<1x16x64xbf16> to vector<16x64xbf16>
    %cst_55 = arith.constant dense<0.000000e+00> : vector<16x128xf32>
    %64 = tpu.matmul %63, %12, %cst_55 {dimension_numbers = #tpu.dot_dimension_numbers<[1], [0], [0], [1], [0, 0, 1, 1], [], []>} : vector<16x64xbf16>, vector<64x128xbf16>, vector<16x128xf32> -> vector<16x128xf32>
    %65 = arith.truncf %64 : vector<16x128xf32> to vector<16x128xbf16>
    %c6_56 = arith.constant 6 : index
    %c0_57 = arith.constant 0 : index
    %c0_58 = arith.constant 0 : index
    %66 = vector.load %arg4[%c6_56, %c0_57, %c0_58] : memref<9x128x128xbf16, #tpu.memory_space<vmem>>, vector<1x128x128xbf16>
    %67 = vector.shape_cast %66 : vector<1x128x128xbf16> to vector<128x128xbf16>
    %cst_59 = arith.constant dense<0.000000e+00> : vector<16x128xf32>
    %68 = tpu.matmul %65, %67, %cst_59 {dimension_numbers = #tpu.dot_dimension_numbers<[1], [0], [0], [1], [0, 0, 1, 1], [], []>} : vector<16x128xbf16>, vector<128x128xbf16>, vector<16x128xf32> -> vector<16x128xf32>
    %69 = arith.addf %61, %68 : vector<16x128xf32>
    %c7 = arith.constant 7 : index
    %c0_60 = arith.constant 0 : index
    %c0_61 = arith.constant 0 : index
    %70 = vector.load %arg2[%c7, %c0_60, %c0_61] : memref<9x16x64xbf16, #tpu.memory_space<vmem>>, vector<1x16x64xbf16>
    %71 = vector.shape_cast %70 : vector<1x16x64xbf16> to vector<16x64xbf16>
    %cst_62 = arith.constant dense<0.000000e+00> : vector<16x128xf32>
    %72 = tpu.matmul %71, %12, %cst_62 {dimension_numbers = #tpu.dot_dimension_numbers<[1], [0], [0], [1], [0, 0, 1, 1], [], []>} : vector<16x64xbf16>, vector<64x128xbf16>, vector<16x128xf32> -> vector<16x128xf32>
    %73 = arith.truncf %72 : vector<16x128xf32> to vector<16x128xbf16>
    %c7_63 = arith.constant 7 : index
    %c0_64 = arith.constant 0 : index
    %c0_65 = arith.constant 0 : index
    %74 = vector.load %arg4[%c7_63, %c0_64, %c0_65] : memref<9x128x128xbf16, #tpu.memory_space<vmem>>, vector<1x128x128xbf16>
    %75 = vector.shape_cast %74 : vector<1x128x128xbf16> to vector<128x128xbf16>
    %cst_66 = arith.constant dense<0.000000e+00> : vector<16x128xf32>
    %76 = tpu.matmul %73, %75, %cst_66 {dimension_numbers = #tpu.dot_dimension_numbers<[1], [0], [0], [1], [0, 0, 1, 1], [], []>} : vector<16x128xbf16>, vector<128x128xbf16>, vector<16x128xf32> -> vector<16x128xf32>
    %77 = arith.addf %69, %76 : vector<16x128xf32>
    %c8 = arith.constant 8 : index
    %c0_67 = arith.constant 0 : index
    %c0_68 = arith.constant 0 : index
    %78 = vector.load %arg2[%c8, %c0_67, %c0_68] : memref<9x16x64xbf16, #tpu.memory_space<vmem>>, vector<1x16x64xbf16>
    %79 = vector.shape_cast %78 : vector<1x16x64xbf16> to vector<16x64xbf16>
    %cst_69 = arith.constant dense<0.000000e+00> : vector<16x128xf32>
    %80 = tpu.matmul %79, %12, %cst_69 {dimension_numbers = #tpu.dot_dimension_numbers<[1], [0], [0], [1], [0, 0, 1, 1], [], []>} : vector<16x64xbf16>, vector<64x128xbf16>, vector<16x128xf32> -> vector<16x128xf32>
    %81 = arith.truncf %80 : vector<16x128xf32> to vector<16x128xbf16>
    %c8_70 = arith.constant 8 : index
    %c0_71 = arith.constant 0 : index
    %c0_72 = arith.constant 0 : index
    %82 = vector.load %arg4[%c8_70, %c0_71, %c0_72] : memref<9x128x128xbf16, #tpu.memory_space<vmem>>, vector<1x128x128xbf16>
    %83 = vector.shape_cast %82 : vector<1x128x128xbf16> to vector<128x128xbf16>
    %cst_73 = arith.constant dense<0.000000e+00> : vector<16x128xf32>
    %84 = tpu.matmul %81, %83, %cst_73 {dimension_numbers = #tpu.dot_dimension_numbers<[1], [0], [0], [1], [0, 0, 1, 1], [], []>} : vector<16x128xbf16>, vector<128x128xbf16>, vector<16x128xf32> -> vector<16x128xf32>
    %85 = arith.addf %77, %84 : vector<16x128xf32>
    %c0_74 = arith.constant 0 : index
    %c0_75 = arith.constant 0 : index
    %86 = vector.load %arg8[%c0_74, %c0_75] : memref<2x128xf32, #tpu.memory_space<vmem>>, vector<1x128xf32>
    %87 = vector.broadcast %86 : vector<1x128xf32> to vector<16x128xf32>
    %88 = arith.mulf %85, %87 : vector<16x128xf32>
    %c1_76 = arith.constant 1 : index
    %c0_77 = arith.constant 0 : index
    %89 = vector.load %arg8[%c1_76, %c0_77] : memref<2x128xf32, #tpu.memory_space<vmem>>, vector<1x128xf32>
    %90 = vector.broadcast %89 : vector<1x128xf32> to vector<16x128xf32>
    %91 = arith.addf %88, %90 : vector<16x128xf32>
    %92 = arith.truncf %91 : vector<16x128xf32> to vector<16x128xbf16>
    %c0_78 = arith.constant 0 : index
    %c0_79 = arith.constant 0 : index
    %93 = vector.load %arg5[%c0_78, %c0_79] : memref<128x128xbf16, #tpu.memory_space<vmem>>, vector<128x128xbf16>
    %cst_80 = arith.constant dense<0.000000e+00> : vector<16x128xf32>
    %94 = tpu.matmul %92, %93, %cst_80 {dimension_numbers = #tpu.dot_dimension_numbers<[1], [0], [0], [1], [0, 0, 1, 1], [], []>} : vector<16x128xbf16>, vector<128x128xbf16>, vector<16x128xf32> -> vector<16x128xf32>
    %c0_81 = arith.constant 0 : index
    %c0_82 = arith.constant 0 : index
    %95 = vector.load %arg9[%c0_81, %c0_82] : memref<1x128xf32, #tpu.memory_space<vmem>>, vector<1x128xf32>
    %96 = vector.broadcast %95 : vector<1x128xf32> to vector<16x128xf32>
    %97 = arith.addf %94, %96 : vector<16x128xf32>
    %cst_83 = arith.constant 0.000000e+00 : f32
    %98 = vector.broadcast %cst_83 : f32 to vector<16x128xf32>
    %99 = arith.maximumf %97, %98 : vector<16x128xf32>
    %100 = arith.truncf %99 : vector<16x128xf32> to vector<16x128xbf16>
    %c0_84 = arith.constant 0 : index
    %c0_85 = arith.constant 0 : index
    %101 = vector.load %arg6[%c0_84, %c0_85] : memref<128x128xbf16, #tpu.memory_space<vmem>>, vector<128x128xbf16>
    %cst_86 = arith.constant dense<0.000000e+00> : vector<16x128xf32>
    %102 = tpu.matmul %100, %101, %cst_86 {dimension_numbers = #tpu.dot_dimension_numbers<[1], [0], [0], [1], [0, 0, 1, 1], [], []>} : vector<16x128xbf16>, vector<128x128xbf16>, vector<16x128xf32> -> vector<16x128xf32>
    %c0_87 = arith.constant 0 : index
    %c0_88 = arith.constant 0 : index
    %103 = vector.load %arg10[%c0_87, %c0_88] : memref<1x128xf32, #tpu.memory_space<vmem>>, vector<1x128xf32>
    %104 = vector.broadcast %103 : vector<1x128xf32> to vector<16x128xf32>
    %105 = arith.addf %102, %104 : vector<16x128xf32>
    %c0_89 = arith.constant 0 : index
    %c0_90 = arith.constant 0 : index
    %c0_91 = arith.constant 0 : index
    %106 = vector.load %arg11[%c0_89, %c0_90, %c0_91] : memref<1x16x128xf32, #tpu.memory_space<vmem>>, vector<1x16x128xf32>
    %107 = vector.shape_cast %106 : vector<1x16x128xf32> to vector<16x128xf32>
    %108 = vector.shape_cast %105 : vector<16x128xf32> to vector<1x16x128xf32>
    tpu.vector_store %arg11[%c0_89, %c0_90, %c0_91], %108 {strides = array<i32>} : memref<1x16x128xf32, #tpu.memory_space<vmem>>, vector<1x16x128xf32>,
    return
  }
  func.func @transform_0(%arg0: i32) -> (i32, i32, i32) {
    %c0_i32 = arith.constant 0 : i32
    %c0_i32_0 = arith.constant 0 : i32
    %c0_i32_1 = arith.constant 0 : i32
    return %arg0, %c0_i32, %c0_i32_0 : i32, i32, i32
  }
  func.func @transform_1(%arg0: i32) -> (i32, i32, i32) {
    %c0_i32 = arith.constant 0 : i32
    %c0_i32_0 = arith.constant 0 : i32
    %c0_i32_1 = arith.constant 0 : i32
    %c0_i32_2 = arith.constant 0 : i32
    return %c0_i32, %c0_i32_0, %c0_i32_1 : i32, i32, i32
  }
  func.func @transform_2(%arg0: i32) -> (i32, i32) {
    %c0_i32 = arith.constant 0 : i32
    %c0_i32_0 = arith.constant 0 : i32
    %c0_i32_1 = arith.constant 0 : i32
    return %c0_i32, %c0_i32_0 : i32, i32
  }
  func.func @transform_3(%arg0: i32) -> (i32, i32, i32) {
    %c0_i32 = arith.constant 0 : i32
    %c0_i32_0 = arith.constant 0 : i32
    %c0_i32_1 = arith.constant 0 : i32
    %c0_i32_2 = arith.constant 0 : i32
    return %c0_i32, %c0_i32_0, %c0_i32_1 : i32, i32, i32
  }
  func.func @transform_4(%arg0: i32) -> (i32, i32) {
    %c0_i32 = arith.constant 0 : i32
    %c0_i32_0 = arith.constant 0 : i32
    %c0_i32_1 = arith.constant 0 : i32
    return %c0_i32, %c0_i32_0 : i32, i32
  }
  func.func @transform_5(%arg0: i32) -> (i32, i32) {
    %c0_i32 = arith.constant 0 : i32
    %c0_i32_0 = arith.constant 0 : i32
    %c0_i32_1 = arith.constant 0 : i32
    return %c0_i32, %c0_i32_0 : i32, i32
  }
  func.func @transform_6(%arg0: i32) -> (i32, i32) {
    %c0_i32 = arith.constant 0 : i32
    %c0_i32_0 = arith.constant 0 : i32
    %c0_i32_1 = arith.constant 0 : i32
    return %c0_i32, %c0_i32_0 : i32, i32
  }
  func.func @transform_7(%arg0: i32) -> (i32, i32) {
    %c0_i32 = arith.constant 0 : i32
    %c0_i32_0 = arith.constant 0 : i32
    %c0_i32_1 = arith.constant 0 : i32
    return %c0_i32, %c0_i32_0 : i32, i32
  }
  func.func @transform_8(%arg0: i32) -> (i32, i32) {
    %c0_i32 = arith.constant 0 : i32
    %c0_i32_0 = arith.constant 0 : i32
    %c0_i32_1 = arith.constant 0 : i32
    return %c0_i32, %c0_i32_0 : i32, i32
  }
  func.func @transform_9(%arg0: i32) -> (i32, i32) {
    %c0_i32 = arith.constant 0 : i32
    %c0_i32_0 = arith.constant 0 : i32
    %c0_i32_1 = arith.constant 0 : i32
    return %c0_i32, %c0_i32_0 : i32, i32
  }
  func.func @transform_10(%arg0: i32) -> (i32, i32, i32) {
    %c0_i32 = arith.constant 0 : i32
    %c0_i32_0 = arith.constant 0 : i32
    %c0_i32_1 = arith.constant 0 : i32
    return %arg0, %c0_i32, %c0_i32_0 : i32, i32, i32
  }
}

</mosaic_0001>

<llo_original>
// kernel: conv_embedding_forward.1
$region0: #{conv_embedding_forward.1}
  #allocation0 [shape = 'u32[]', space=smem, size = 0x4, offset = 0x4, fixed_abs, tag = 'smem constant byte address 0x4 - core index']
  #allocation1 [shape = 'u32[144,128]{1,0:T(1,128)}', space=vmem, size = 0x12000, scoped, tag = 'internal scratch']
  %s0 = inlined_call_operand.vmem [shape: bf16[2,64,128], index: 0, kind: input, shape index: {}]
  %s1 = inlined_call_operand.vmem [shape: bf16[9,16,64], index: 1, kind: input, shape index: {}]
  %s2 = inlined_call_operand.vmem [shape: bf16[128,128], index: 2, kind: input, shape index: {}]
  %s3 = inlined_call_operand.vmem [shape: bf16[9,128,128], index: 3, kind: input, shape index: {}]
  %s4 = inlined_call_operand.vmem [shape: bf16[128,128], index: 4, kind: input, shape index: {}]
  %s5 = inlined_call_operand.vmem [shape: bf16[128,128], index: 5, kind: input, shape index: {}]
  %s6 = inlined_call_operand.vmem [shape: f32[2,128], index: 6, kind: input, shape index: {}]
  %s7 = inlined_call_operand.vmem [shape: f32[2,128], index: 7, kind: input, shape index: {}]
  %s8 = inlined_call_operand.vmem [shape: f32[1,128], index: 8, kind: input, shape index: {}]
  %s9 = inlined_call_operand.vmem [shape: f32[1,128], index: 9, kind: input, shape index: {}]
  %s10 = inlined_call_operand.hbm [shape: f32[2,16,128], index: 10, kind: output, shape index: {}]
  %s11 = sld [smem:[#allocation0]]
  $region73: #{conv_embedding_forward.1} parent=0
    _
  %s13 = ssub.s32 1, %s11
  %s14 = scalar_select 0, %s13, %s11
  $region1: #{conv_embedding_forward.1} parent=0
    #allocation2 [shape = 'u8[16384]{0}', space=vmem, size = 0x4000, scoped, tag = 'output window, operand 0']
    #allocation3 [shape = 's32[2]{0}', space=sflag, size = 0x8, scoped, tag = 'scoped memory for conv_embedding_forward.1']
    %15 = vsyncpa [#allocation3], 0
    %s16 = scalar_lea.sflag [#allocation3], 1
    %17 = vsyncpa %s16, 0
    loop: start=0, step=1, limit=4
    $region2: #{conv_embedding_forward.1} parent=1 // loop_pre_header
      _
    $region3: #{conv_embedding_forward.1} parent=1 // loop_header
      %s19 = sphi 0, %s23
      %p20 = scmp.ge.s32.totalorder %s19, 4
      %s29 = sphi 0, %s31
      %s32 = sphi 0, %s29
      %s33 = sphi 0, %s32
      %s49 = sphi 0, %s33
      %s53 = sphi 0, %s53
      %s55 = sphi 0, %s53
      %s56 = sphi 0, %s55
      %s70 = sphi 0, %s56
      %s74 = sphi 0, %s74
      %s76 = sphi 0, %s74
      %s77 = sphi 0, %s76
      %s91 = sphi 0, %s77
      %s95 = sphi 0, %s95
      %s97 = sphi 0, %s95
      %s98 = sphi 0, %s97
      %s112 = sphi 0, %s98
      %s116 = sphi 0, %s116
      %s118 = sphi 0, %s116
      %s119 = sphi 0, %s118
      %s133 = sphi 0, %s119
      %s137 = sphi 0, %s137
      %s139 = sphi 0, %s137
      %s140 = sphi 0, %s139
      %s154 = sphi 0, %s140
      %s158 = sphi 0, %s158
      %s160 = sphi 0, %s158
      %s161 = sphi 0, %s160
      %s175 = sphi 0, %s161
      %s179 = sphi 0, %s179
      %s181 = sphi 0, %s179
      %s182 = sphi 0, %s181
      %s196 = sphi 0, %s182
      %s200 = sphi 0, %s200
      %s202 = sphi 0, %s200
      %s203 = sphi 0, %s202
      %s217 = sphi 0, %s203
      %s221 = sphi 0, %s221
      %s223 = sphi 0, %s221
      %s224 = sphi 0, %s223
      %s238 = sphi 0, %s224
      %s244 = sphi 0, %s246
      %s247 = sphi 0, %s244
      %s248 = sphi 0, %s247
      %s264 = sphi 0, %s248
    $region4: #{conv_embedding_forward.1} parent=1 // loop_header_branch
      %22 = sbr.rel (%p20) target = $region8
    $region5: #{conv_embedding_forward.1} parent=1 // loop_body
      %s24 = ssub.s32 %s19, 1
      %s25 = ssub.s32 %s19, 2
      %s26 = sadd.s32 %s19, 1
      %s27 = ssub.s32 %s19, %s26
      %p28 = scmp.eq.s32.totalorder %s27, 0
      %s30 = sadd.s32 %s29, 1
      %s31 = scalar_select %p28, %s29, %s30
      %p34 = pneg %p28
      %p35 = scmp.eq.s32.totalorder %s19, 1
      %p36 = por %p34, %p35
      %p37 = scmp.ne.s32.totalorder %s29, %s32
      %p38 = scmp.eq.s32.totalorder %s19, 0
      %p39 = por %p37, %p38
      %p40 = scmp.ne.s32.totalorder %s29, %s32
      %p41 = scmp.eq.s32.totalorder %s24, 1
      %p42 = por %p40, %p41
      %p43 = scmp.ne.s32.totalorder %s32, %s33
      %p44 = scmp.eq.s32.totalorder %s24, 0
      %p45 = por %p43, %p44
      %p46 = scmp.ne.s32.totalorder %s32, %s33
      %p47 = scmp.eq.s32.totalorder %s25, 1
      %p48 = por %p46, %p47
      %p50 = scmp.ne.s32.totalorder %s33, %s49
      %p51 = scmp.eq.s32.totalorder %s25, 0
      %p52 = por %p50, %p51
      %s54 = sadd.s32 %s53, 1
      %p57 = scmp.eq.s32.totalorder %s19, 1
      %p58 = scmp.ne.s32.totalorder %s53, %s55
      %p59 = scmp.eq.s32.totalorder %s19, 0
      %p60 = por %p58, %p59
      %p61 = scmp.ne.s32.totalorder %s53, %s55
      %p62 = scmp.eq.s32.totalorder %s24, 1
      %p63 = por %p61, %p62
      %p64 = scmp.ne.s32.totalorder %s55, %s56
      %p65 = scmp.eq.s32.totalorder %s24, 0
      %p66 = por %p64, %p65
      %p67 = scmp.ne.s32.totalorder %s55, %s56
      %p68 = scmp.eq.s32.totalorder %s25, 1
      %p69 = por %p67, %p68
      %p71 = scmp.ne.s32.totalorder %s56, %s70
      %p72 = scmp.eq.s32.totalorder %s25, 0
      %p73 = por %p71, %p72
      %s75 = sadd.s32 %s74, 1
      %p78 = scmp.eq.s32.totalorder %s19, 1
      %p79 = scmp.ne.s32.totalorder %s74, %s76
      %p80 = scmp.eq.s32.totalorder %s19, 0
      %p81 = por %p79, %p80
      %p82 = scmp.ne.s32.totalorder %s74, %s76
      %p83 = scmp.eq.s32.totalorder %s24, 1
      %p84 = por %p82, %p83
      %p85 = scmp.ne.s32.totalorder %s76, %s77
      %p86 = scmp.eq.s32.totalorder %s24, 0
      %p87 = por %p85, %p86
      %p88 = scmp.ne.s32.totalorder %s76, %s77
      %p89 = scmp.eq.s32.totalorder %s25, 1
      %p90 = por %p88, %p89
      %p92 = scmp.ne.s32.totalorder %s77, %s91
      %p93 = scmp.eq.s32.totalorder %s25, 0
      %p94 = por %p92, %p93
      %s96 = sadd.s32 %s95, 1
      %p99 = scmp.eq.s32.totalorder %s19, 1
      %p100 = scmp.ne.s32.totalorder %s95, %s97
      %p101 = scmp.eq.s32.totalorder %s19, 0
      %p102 = por %p100, %p101
      %p103 = scmp.ne.s32.totalorder %s95, %s97
      %p104 = scmp.eq.s32.totalorder %s24, 1
      %p105 = por %p103, %p104
      %p106 = scmp.ne.s32.totalorder %s97, %s98
      %p107 = scmp.eq.s32.totalorder %s24, 0
      %p108 = por %p106, %p107
      %p109 = scmp.ne.s32.totalorder %s97, %s98
      %p110 = scmp.eq.s32.totalorder %s25, 1
      %p111 = por %p109, %p110
      %p113 = scmp.ne.s32.totalorder %s98, %s112
      %p114 = scmp.eq.s32.totalorder %s25, 0
      %p115 = por %p113, %p114
      %s117 = sadd.s32 %s116, 1
      %p120 = scmp.eq.s32.totalorder %s19, 1
      %p121 = scmp.ne.s32.totalorder %s116, %s118
      %p122 = scmp.eq.s32.totalorder %s19, 0
      %p123 = por %p121, %p122
      %p124 = scmp.ne.s32.totalorder %s116, %s118
      %p125 = scmp.eq.s32.totalorder %s24, 1
      %p126 = por %p124, %p125
      %p127 = scmp.ne.s32.totalorder %s118, %s119
      %p128 = scmp.eq.s32.totalorder %s24, 0
      %p129 = por %p127, %p128
      %p130 = scmp.ne.s32.totalorder %s118, %s119
      %p131 = scmp.eq.s32.totalorder %s25, 1
      %p132 = por %p130, %p131
      %p134 = scmp.ne.s32.totalorder %s119, %s133
      %p135 = scmp.eq.s32.totalorder %s25, 0
      %p136 = por %p134, %p135
      %s138 = sadd.s32 %s137, 1
      %p141 = scmp.eq.s32.totalorder %s19, 1
      %p142 = scmp.ne.s32.totalorder %s137, %s139
      %p143 = scmp.eq.s32.totalorder %s19, 0
      %p144 = por %p142, %p143
      %p145 = scmp.ne.s32.totalorder %s137, %s139
      %p146 = scmp.eq.s32.totalorder %s24, 1
      %p147 = por %p145, %p146
      %p148 = scmp.ne.s32.totalorder %s139, %s140
      %p149 = scmp.eq.s32.totalorder %s24, 0
      %p150 = por %p148, %p149
      %p151 = scmp.ne.s32.totalorder %s139, %s140
      %p152 = scmp.eq.s32.totalorder %s25, 1
      %p153 = por %p151, %p152
      %p155 = scmp.ne.s32.totalorder %s140, %s154
      %p156 = scmp.eq.s32.totalorder %s25, 0
      %p157 = por %p155, %p156
      %s159 = sadd.s32 %s158, 1
      %p162 = scmp.eq.s32.totalorder %s19, 1
      %p163 = scmp.ne.s32.totalorder %s158, %s160
      %p164 = scmp.eq.s32.totalorder %s19, 0
      %p165 = por %p163, %p164
      %p166 = scmp.ne.s32.totalorder %s158, %s160
      %p167 = scmp.eq.s32.totalorder %s24, 1
      %p168 = por %p166, %p167
      %p169 = scmp.ne.s32.totalorder %s160, %s161
      %p170 = scmp.eq.s32.totalorder %s24, 0
      %p171 = por %p169, %p170
      %p172 = scmp.ne.s32.totalorder %s160, %s161
      %p173 = scmp.eq.s32.totalorder %s25, 1
      %p174 = por %p172, %p173
      %p176 = scmp.ne.s32.totalorder %s161, %s175
      %p177 = scmp.eq.s32.totalorder %s25, 0
      %p178 = por %p176, %p177
      %s180 = sadd.s32 %s179, 1
      %p183 = scmp.eq.s32.totalorder %s19, 1
      %p184 = scmp.ne.s32.totalorder %s179, %s181
      %p185 = scmp.eq.s32.totalorder %s19, 0
      %p186 = por %p184, %p185
      %p187 = scmp.ne.s32.totalorder %s179, %s181
      %p188 = scmp.eq.s32.totalorder %s24, 1
      %p189 = por %p187, %p188
      %p190 = scmp.ne.s32.totalorder %s181, %s182
      %p191 = scmp.eq.s32.totalorder %s24, 0
      %p192 = por %p190, %p191
      %p193 = scmp.ne.s32.totalorder %s181, %s182
      %p194 = scmp.eq.s32.totalorder %s25, 1
      %p195 = por %p193, %p194
      %p197 = scmp.ne.s32.totalorder %s182, %s196
      %p198 = scmp.eq.s32.totalorder %s25, 0
      %p199 = por %p197, %p198
      %s201 = sadd.s32 %s200, 1
      %p204 = scmp.eq.s32.totalorder %s19, 1
      %p205 = scmp.ne.s32.totalorder %s200, %s202
      %p206 = scmp.eq.s32.totalorder %s19, 0
      %p207 = por %p205, %p206
      %p208 = scmp.ne.s32.totalorder %s200, %s202
      %p209 = scmp.eq.s32.totalorder %s24, 1
      %p210 = por %p208, %p209
      %p211 = scmp.ne.s32.totalorder %s202, %s203
      %p212 = scmp.eq.s32.totalorder %s24, 0
      %p213 = por %p211, %p212
      %p214 = scmp.ne.s32.totalorder %s202, %s203
      %p215 = scmp.eq.s32.totalorder %s25, 1
      %p216 = por %p214, %p215
      %p218 = scmp.ne.s32.totalorder %s203, %s217
      %p219 = scmp.eq.s32.totalorder %s25, 0
      %p220 = por %p218, %p219
      %s222 = sadd.s32 %s221, 1
      %p225 = scmp.eq.s32.totalorder %s19, 1
      %p226 = scmp.ne.s32.totalorder %s221, %s223
      %p227 = scmp.eq.s32.totalorder %s19, 0
      %p228 = por %p226, %p227
      %p229 = scmp.ne.s32.totalorder %s221, %s223
      %p230 = scmp.eq.s32.totalorder %s24, 1
      %p231 = por %p229, %p230
      %p232 = scmp.ne.s32.totalorder %s223, %s224
      %p233 = scmp.eq.s32.totalorder %s24, 0
      %p234 = por %p232, %p233
      %p235 = scmp.ne.s32.totalorder %s223, %s224
      %p236 = scmp.eq.s32.totalorder %s25, 1
      %p237 = por %p235, %p236
      %p239 = scmp.ne.s32.totalorder %s224, %s238
      %p240 = scmp.eq.s32.totalorder %s25, 0
      %p241 = por %p239, %p240
      %s242 = ssub.s32 %s19, %s26
      %p243 = scmp.eq.s32.totalorder %s242, 0
      %s245 = sadd.s32 %s244, 1
      %s246 = scalar_select %p243, %s244, %s245
      %p249 = pneg %p243
      %p250 = scmp.eq.s32.totalorder %s19, 1
      %p251 = por %p249, %p250
      %p252 = scmp.ne.s32.totalorder %s244, %s247
      %p253 = scmp.eq.s32.totalorder %s19, 0
      %p254 = por %p252, %p253
      %p255 = scmp.ne.s32.totalorder %s244, %s247
      %p256 = scmp.eq.s32.totalorder %s24, 1
      %p257 = por %p255, %p256
      %p258 = scmp.ne.s32.totalorder %s247, %s248
      %p259 = scmp.eq.s32.totalorder %s24, 0
      %p260 = por %p258, %p259
      %p261 = scmp.ne.s32.totalorder %s247, %s248
      %p262 = scmp.eq.s32.totalorder %s25, 1
      %p263 = por %p261, %p262
      %p265 = scmp.ne.s32.totalorder %s248, %s264
      %p266 = scmp.eq.s32.totalorder %s25, 0
      %p267 = por %p265, %p266
      %p268 = scmp.le.s32.totalorder 1, %s19
      %p269 = scmp.lt.s32.totalorder %s19, 3
      %p270 = pnand %p268, %p269
      %p271 = pneg %p270
      // Predicated region
      $region9: #{conv_embedding_forward.1} parent=5 // pred_check
        _
      $region10: #{conv_embedding_forward.1} parent=5 // pred_check_branch
        %273 = sbr.rel (%p270) target = $region12
      $region11: #{conv_embedding_forward.1} parent=5 // pred_region
        %s274 = ssub.s32 %s19, 1
        // Predicated region
        $region13: #{conv_embedding_forward.1} parent=11 // pred_check
          %p275 = pneg %p66
        $region14: #{conv_embedding_forward.1} parent=11 // pred_check_branch
          %277 = sbr.rel (%p275) target = $region16
        $region15: #{conv_embedding_forward.1} parent=11 // pred_region
          _
        $region16: #{conv_embedding_forward.1} parent=11 // pred_fallthru
          _
        // Predicated region
        $region17: #{conv_embedding_forward.1} parent=11 // pred_check
          %p278 = pneg %p87
        $region18: #{conv_embedding_forward.1} parent=11 // pred_check_branch
          %280 = sbr.rel (%p278) target = $region20
        $region19: #{conv_embedding_forward.1} parent=11 // pred_region
          _
        $region20: #{conv_embedding_forward.1} parent=11 // pred_fallthru
          _
        // Predicated region
        $region21: #{conv_embedding_forward.1} parent=11 // pred_check
          %p281 = pneg %p108
        $region22: #{conv_embedding_forward.1} parent=11 // pred_check_branch
          %283 = sbr.rel (%p281) target = $region24
        $region23: #{conv_embedding_forward.1} parent=11 // pred_region
          _
        $region24: #{conv_embedding_forward.1} parent=11 // pred_fallthru
          _
        // Predicated region
        $region25: #{conv_embedding_forward.1} parent=11 // pred_check
          %p284 = pneg %p129
        $region26: #{conv_embedding_forward.1} parent=11 // pred_check_branch
          %286 = sbr.rel (%p284) target = $region28
        $region27: #{conv_embedding_forward.1} parent=11 // pred_region
          _
        $region28: #{conv_embedding_forward.1} parent=11 // pred_fallthru
          _
        // Predicated region
        $region29: #{conv_embedding_forward.1} parent=11 // pred_check
          %p287 = pneg %p150
        $region30: #{conv_embedding_forward.1} parent=11 // pred_check_branch
          %289 = sbr.rel (%p287) target = $region32
        $region31: #{conv_embedding_forward.1} parent=11 // pred_region
          _
        $region32: #{conv_embedding_forward.1} parent=11 // pred_fallthru
          _
        // Predicated region
        $region33: #{conv_embedding_forward.1} parent=11 // pred_check
          %p290 = pneg %p171
        $region34: #{conv_embedding_forward.1} parent=11 // pred_check_branch
          %292 = sbr.rel (%p290) target = $region36
        $region35: #{conv_embedding_forward.1} parent=11 // pred_region
          _
        $region36: #{conv_embedding_forward.1} parent=11 // pred_fallthru
          _
        // Predicated region
        $region37: #{conv_embedding_forward.1} parent=11 // pred_check
          %p293 = pneg %p192
        $region38: #{conv_embedding_forward.1} parent=11 // pred_check_branch
          %295 = sbr.rel (%p293) target = $region40
        $region39: #{conv_embedding_forward.1} parent=11 // pred_region
          _
        $region40: #{conv_embedding_forward.1} parent=11 // pred_fallthru
          _
        // Predicated region
        $region41: #{conv_embedding_forward.1} parent=11 // pred_check
          %p296 = pneg %p213
        $region42: #{conv_embedding_forward.1} parent=11 // pred_check_branch
          %298 = sbr.rel (%p296) target = $region44
        $region43: #{conv_embedding_forward.1} parent=11 // pred_region
          _
        $region44: #{conv_embedding_forward.1} parent=11 // pred_fallthru
          _
        // Predicated region
        $region45: #{conv_embedding_forward.1} parent=11 // pred_check
          %p299 = pneg %p234
        $region46: #{conv_embedding_forward.1} parent=11 // pred_check_branch
          %301 = sbr.rel (%p299) target = $region48
        $region47: #{conv_embedding_forward.1} parent=11 // pred_region
          _
        $region48: #{conv_embedding_forward.1} parent=11 // pred_fallthru
          _
      $region12: #{conv_embedding_forward.1} parent=5 // pred_fallthru
        _
      %p302 = scmp.lt.s32.totalorder %s19, 2
      // Predicated region
      $region49: #{conv_embedding_forward.1} parent=5 // pred_check
        %p303 = pneg %p302
      $region50: #{conv_embedding_forward.1} parent=5 // pred_check_branch
        %305 = sbr.rel (%p303) target = $region52
      $region51: #{conv_embedding_forward.1} parent=5 // pred_region
        // Predicated region
        $region53: #{conv_embedding_forward.1} parent=51 // pred_check
          %p306 = pneg %p39
        $region54: #{conv_embedding_forward.1} parent=51 // pred_check_branch
          %308 = sbr.rel (%p306) target = $region56
        $region55: #{conv_embedding_forward.1} parent=51 // pred_region
          %p309 = scmp.lt.s32.totalorder %s19, 1
          %s310 = scalar_select %p309, %s19, 1
          %s311 = smul.addr %s310, 8
          %s312 = smul.addr %s311, 4
          %s313 = scalar_lea.vmem %s0, %s312
        $region56: #{conv_embedding_forward.1} parent=51 // pred_fallthru
          _
      $region52: #{conv_embedding_forward.1} parent=5 // pred_fallthru
        _
      %p314 = scmp.le.s32.totalorder 1, %s19
      %p315 = scmp.lt.s32.totalorder %s19, 3
      %p316 = pnand %p314, %p315
      %p317 = pneg %p316
      // Predicated region
      $region57: #{conv_embedding_forward.1} parent=5 // pred_check
        _
      $region58: #{conv_embedding_forward.1} parent=5 // pred_check_branch
        %319 = sbr.rel (%p316) target = $region60
      $region59: #{conv_embedding_forward.1} parent=5 // pred_region
        %s320 = ssub.s32 %s19, 1
        %p321 = scmp.lt.s32.totalorder %s24, 1
        %s322 = scalar_select %p321, %s24, 1
        %s323 = smul.addr %s322, 8
        %s324 = smul.addr %s323, 4
        %s325 = scalar_lea.vmem %s0, %s324
        %p326 = pneg %p45
        %p327 = pneg %p42
        %p328 = pneg %p66
        %p329 = pneg %p63
        %p330 = pneg %p87
        %p331 = pneg %p84
        %p332 = pneg %p108
        %p333 = pneg %p105
        %p334 = pneg %p129
        %p335 = pneg %p126
        %p336 = pneg %p150
        %p337 = pneg %p147
        %p338 = pneg %p171
        %p339 = pneg %p168
        %p340 = pneg %p192
        %p341 = pneg %p189
        %p342 = pneg %p213
        %p343 = pneg %p210
        %p344 = pneg %p234
        %p345 = pneg %p231
        %p346 = pneg %p260
        %p347 = pneg %p257
        %s348 = sand.u32 %s247, 1
        %s349 = scalar_lea.sflag [#allocation3], %s348
        %s350 = sand.u32 %s247, 1
        %s351 = smul.addr %s350, 16
        %s352 = scalar_lea.vmem [#allocation2], %s351
        %p353 = scmp.lt.s32.totalorder %s24, 1
        %s354 = scalar_select %p353, %s24, 1
        %s355 = smul.addr %s354, 8
        %s356 = smul.addr %s355, 4
        %s357 = scalar_lea.vmem %s0, %s356
        %v359 = vld [vmem:[%s357] sm:$0xf]
        %v360 = vld [vmem:[%s357 + $0x4] sm:$0xf]
        %v361 = vld [vmem:[%s357 + $0x8] sm:$0xf]
        %v362 = vld [vmem:[%s357 + $0xc] sm:$0xf]
        %v363 = vld [vmem:[%s357 + $0x10] sm:$0xf]
        %v364 = vld [vmem:[%s357 + $0x14] sm:$0xf]
        %v365 = vld [vmem:[%s357 + $0x18] sm:$0xf]
        %v366 = vld [vmem:[%s357 + $0x1c] sm:$0xf]
        %v367 = vld [vmem:[%s2] sm:$0xf]
        %v368 = vld [vmem:[%s2 + $0x4] sm:$0xf]
        %v369 = vld [vmem:[%s2 + $0x8] sm:$0xf]
        %v370 = vld [vmem:[%s2 + $0xc] sm:$0xf]
        %v371 = vld [vmem:[%s2 + $0x10] sm:$0xf]
        %v372 = vld [vmem:[%s2 + $0x14] sm:$0xf]
        %v373 = vld [vmem:[%s2 + $0x18] sm:$0xf]
        %v374 = vld [vmem:[%s2 + $0x1c] sm:$0xf]
        %v375 = vld [vmem:[%s2 + $0x20] sm:$0xf]
        %v376 = vld [vmem:[%s2 + $0x24] sm:$0xf]
        %v377 = vld [vmem:[%s2 + $0x28] sm:$0xf]
        %v378 = vld [vmem:[%s2 + $0x2c] sm:$0xf]
        %v379 = vld [vmem:[%s2 + $0x30] sm:$0xf]
        %v380 = vld [vmem:[%s2 + $0x34] sm:$0xf]
        %v381 = vld [vmem:[%s2 + $0x38] sm:$0xf]
        %v382 = vld [vmem:[%s2 + $0x3c] sm:$0xf]
        %v391 = vunpack.c.l.b16 %v359
        %v392 = vunpack.c.l.b16 %v360
        %v393 = vunpack.c.l.b16 %v361
        %v394 = vunpack.c.l.b16 %v362
        %v395 = vunpack.c.l.b16 %v363
        %v396 = vunpack.c.l.b16 %v364
        %v397 = vunpack.c.l.b16 %v365
        %v398 = vunpack.c.l.b16 %v366
        %v399 = vpack.c.b16 %v392, %v391
        %v400 = vpack.c.b16 %v394, %v393
        %v401 = vpack.c.b16 %v396, %v395
        %v402 = vpack.c.b16 %v398, %v397
        %v423 = vunpack.c.l.b16 %v367
        %v424 = vunpack.c.l.b16 %v368
        %v425 = vunpack.c.l.b16 %v369
        %v426 = vunpack.c.l.b16 %v370
        %v427 = vunpack.c.l.b16 %v371
        %v428 = vunpack.c.l.b16 %v372
        %v429 = vunpack.c.l.b16 %v373
        %v430 = vunpack.c.l.b16 %v374
        %v431 = vunpack.c.l.b16 %v375
        %v432 = vunpack.c.l.b16 %v376
        %v433 = vunpack.c.l.b16 %v377
        %v434 = vunpack.c.l.b16 %v378
        %v435 = vunpack.c.l.b16 %v379
        %v436 = vunpack.c.l.b16 %v380
        %v437 = vunpack.c.l.b16 %v381
        %v438 = vunpack.c.l.b16 %v382
        %v439 = vpack.c.b16 %v424, %v423
        %v440 = vpack.c.b16 %v426, %v425
        %v441 = vpack.c.b16 %v428, %v427
        %v442 = vpack.c.b16 %v430, %v429
        %v443 = vpack.c.b16 %v432, %v431
        %v444 = vpack.c.b16 %v434, %v433
        %v445 = vpack.c.b16 %v436, %v435
        %v446 = vpack.c.b16 %v438, %v437
        %455 = vmatprep.subr.bf16.mxu0 0
        %456 = vmatpush1.bf16.msra.mxu0 %v446
        %457 = vmatprep.subr.bf16.mxu0 0
        %458 = vmatpush1.bf16.msra.mxu0 %v445
        %459 = vmatprep.subr.bf16.mxu0 0
        %460 = vmatpush1.bf16.msra.mxu0 %v444
        %461 = vmatprep.subr.bf16.mxu0 0
        %462 = vmatpush1.bf16.msra.mxu0 %v443
        %463 = vmatprep.subr.bf16.mxu0 0
        %464 = vmatpush1.bf16.msra.mxu0 %v442
        %465 = vmatprep.subr.bf16.mxu0 0
        %466 = vmatpush1.bf16.msra.mxu0 %v441
        %467 = vmatprep.subr.bf16.mxu0 0
        %468 = vmatpush1.bf16.msra.mxu0 %v440
        %469 = vmatprep.subr.bf16.mxu0 0
        %470 = vmatpush1.bf16.msra.mxu0 %v439
        %471 = vmatprep.subr.bf16.mxu0 0
        %472 = vmatpush2.bf16.msra.mxu0 0
        %473 = vmatprep.subr.bf16.mxu0 0
        %474 = vmatpush2.bf16.msra.mxu0 0
        %475 = vmatprep.subr.bf16.mxu0 0
        %476 = vmatpush2.bf16.msra.mxu0 0
        %477 = vmatprep.subr.bf16.mxu0 0
        %478 = vmatpush2.bf16.msra.mxu0 0
        %479 = vmatprep.subr.bf16.mxu0 0
        %480 = vmatpush2.bf16.msra.mxu0 0
        %481 = vmatprep.subr.bf16.mxu0 0
        %482 = vmatpush2.bf16.msra.mxu0 0
        %483 = vmatprep.subr.bf16.mxu0 0
        %484 = vmatpush2.bf16.msra.mxu0 0
        %485 = vmatprep.subr.bf16.mxu0 0
        %486 = vmatpush2.bf16.msra.mxu0 0
        %487 = vmatprep.mubr.bf16.mxu0 0
        %488 = vmatmul.mubr.bf16.gmra.mxu0 %v399
        %v489 = vpop.f32.mrf.mxu0
        %v490 = vadd.f32 0.0, %v489
        %v491 = vpop.f32.mrf.mxu0
        %v492 = vpop.f32.mrf.mxu0
        %v493 = vadd.f32 0.0, %v492
        %v494 = vpop.f32.mrf.mxu0
        %495 = vmatprep.mubr.bf16.mxu0 0
        %496 = vmatmul.mubr.bf16.gmra.mxu0 %v400
        %v497 = vpop.f32.mrf.mxu0
        %v498 = vadd.f32 0.0, %v497
        %v499 = vpop.f32.mrf.mxu0
        %v500 = vpop.f32.mrf.mxu0
        %v501 = vadd.f32 0.0, %v500
        %v502 = vpop.f32.mrf.mxu0
        %503 = vmatprep.mubr.bf16.mxu0 0
        %504 = vmatmul.mubr.bf16.gmra.mxu0 %v401
        %v505 = vpop.f32.mrf.mxu0
        %v506 = vadd.f32 0.0, %v505
        %v507 = vpop.f32.mrf.mxu0
        %v508 = vpop.f32.mrf.mxu0
        %v509 = vadd.f32 0.0, %v508
        %v510 = vpop.f32.mrf.mxu0
        %511 = vmatprep.mubr.bf16.mxu0 0
        %512 = vmatmul.mubr.bf16.gmra.mxu0 %v402
        %v513 = vpop.f32.mrf.mxu0
        %v514 = vadd.f32 0.0, %v513
        %v515 = vpop.f32.mrf.mxu0
        %v516 = vpop.f32.mrf.mxu0
        %v517 = vadd.f32 0.0, %v516
        %v518 = vpop.f32.mrf.mxu0
        %519 = vdwg.mxu0
        %v520 = vld [vmem:[%s6] sm:$0x1]
        %v521 = vlaneseq
        %v522 = vshrl.u32 %v521, 7
        %v523 = vsub.s32 0, %v522
        %v524 = vrot.slane %v520, %v523
        %v525 = vmul.f32 %v490, %v524
        %v526 = vmul.f32 %v493, %v524
        %v527 = vmul.f32 %v498, %v524
        %v528 = vmul.f32 %v501, %v524
        %v529 = vmul.f32 %v506, %v524
        %v530 = vmul.f32 %v509, %v524
        %v531 = vmul.f32 %v514, %v524
        %v532 = vmul.f32 %v517, %v524
        %v533 = vld [vmem:[%s6 + $0x1] sm:$0x1]
        %v534 = vlaneseq
        %v535 = vshrl.u32 %v534, 7
        %v536 = vsub.s32 0, %v535
        %v537 = vrot.slane %v533, %v536
        %v538 = vadd.f32 %v525, %v537
        %v539 = vadd.f32 %v526, %v537
        %v540 = vadd.f32 %v527, %v537
        %v541 = vadd.f32 %v528, %v537
        %v542 = vadd.f32 %v529, %v537
        %v543 = vadd.f32 %v530, %v537
        %v544 = vadd.f32 %v531, %v537
        %v545 = vadd.f32 %v532, %v537
        %v546 = vmax.f32 %v538, 0.0
        %v547 = vmax.f32 %v539, 0.0
        %v548 = vmax.f32 %v540, 0.0
        %v549 = vmax.f32 %v541, 0.0
        %v550 = vmax.f32 %v542, 0.0
        %v551 = vmax.f32 %v543, 0.0
        %v552 = vmax.f32 %v544, 0.0
        %v553 = vmax.f32 %v545, 0.0
        %v554 = vpack.c.bf16 %v547, %v546
        %v555 = vpack.c.bf16 %v549, %v548
        %v556 = vpack.c.bf16 %v551, %v550
        %v557 = vpack.c.bf16 %v553, %v552
        %v558 = vld [vmem:[%s1] sm:$0xf]
        %v559 = vld [vmem:[%s1 + $0x4] sm:$0xf]
        %v562 = vunpack.c.l.b16 %v558
        %v563 = vunpack.c.l.b16 %v559
        %v564 = vpack.c.b16 %v563, %v562
        %vm565 = vcmask 523264
        %v567 = vsel %vm565, %v564, 0
        %569 = vmatprep.subr.bf16.mxu0 0
        %570 = vmatpush1.bf16.msra.mxu0 0
        %571 = vmatprep.subr.bf16.mxu0 0
        %572 = vmatpush1.bf16.msra.mxu0 0
        %573 = vmatprep.subr.bf16.mxu0 0
        %574 = vmatpush1.bf16.msra.mxu0 0
        %575 = vmatprep.subr.bf16.mxu0 0
        %576 = vmatpush1.bf16.msra.mxu0 0
        %577 = vmatprep.subr.bf16.mxu0 0
        %578 = vmatpush1.bf16.msra.mxu0 %v557
        %579 = vmatprep.subr.bf16.mxu0 0
        %580 = vmatpush1.bf16.msra.mxu0 %v556
        %581 = vmatprep.subr.bf16.mxu0 0
        %582 = vmatpush1.bf16.msra.mxu0 %v555
        %583 = vmatprep.subr.bf16.mxu0 0
        %584 = vmatpush1.bf16.msra.mxu0 %v554
        %585 = vmatprep.subr.bf16.mxu0 0
        %586 = vmatpush2.bf16.msra.mxu0 0
        %587 = vmatprep.subr.bf16.mxu0 0
        %588 = vmatpush2.bf16.msra.mxu0 0
        %589 = vmatprep.subr.bf16.mxu0 0
        %590 = vmatpush2.bf16.msra.mxu0 0
        %591 = vmatprep.subr.bf16.mxu0 0
        %592 = vmatpush2.bf16.msra.mxu0 0
        %593 = vmatprep.subr.bf16.mxu0 0
        %594 = vmatpush2.bf16.msra.mxu0 0
        %595 = vmatprep.subr.bf16.mxu0 0
        %596 = vmatpush2.bf16.msra.mxu0 0
        %597 = vmatprep.subr.bf16.mxu0 0
        %598 = vmatpush2.bf16.msra.mxu0 0
        %599 = vmatprep.subr.bf16.mxu0 0
        %600 = vmatpush2.bf16.msra.mxu0 0
        %601 = vmatprep.mubr.bf16.mxu0 0
        %602 = vmatmul.mubr.bf16.gmra.mxu0 %v567
        %v603 = vpop.f32.mrf.mxu0
        %v604 = vadd.f32 0.0, %v603
        %v605 = vpop.f32.mrf.mxu0
        %v606 = vpop.f32.mrf.mxu0
        %v607 = vadd.f32 0.0, %v606
        %v608 = vpop.f32.mrf.mxu0
        %609 = vdwg.mxu0
        %v610 = vpack.c.bf16 %v607, %v604
        %v611 = vld [vmem:[%s3] sm:$0xf]
        %v612 = vld [vmem:[%s3 + $0x4] sm:$0xf]
        %v613 = vld [vmem:[%s3 + $0x8] sm:$0xf]
        %v614 = vld [vmem:[%s3 + $0xc] sm:$0xf]
        %v615 = vld [vmem:[%s3 + $0x10] sm:$0xf]
        %v616 = vld [vmem:[%s3 + $0x14] sm:$0xf]
        %v617 = vld [vmem:[%s3 + $0x18] sm:$0xf]
        %v618 = vld [vmem:[%s3 + $0x1c] sm:$0xf]
        %v619 = vld [vmem:[%s3 + $0x20] sm:$0xf]
        %v620 = vld [vmem:[%s3 + $0x24] sm:$0xf]
        %v621 = vld [vmem:[%s3 + $0x28] sm:$0xf]
        %v622 = vld [vmem:[%s3 + $0x2c] sm:$0xf]
        %v623 = vld [vmem:[%s3 + $0x30] sm:$0xf]
        %v624 = vld [vmem:[%s3 + $0x34] sm:$0xf]
        %v625 = vld [vmem:[%s3 + $0x38] sm:$0xf]
        %v626 = vld [vmem:[%s3 + $0x3c] sm:$0xf]
        %s627 = scalar_lea.vmem %s1, 8
        %v628 = vld [vmem:[%s627] sm:$0xf]
        %v629 = vld [vmem:[%s627 + $0x4] sm:$0xf]
        %v632 = vunpack.c.l.b16 %v628
        %v633 = vunpack.c.l.b16 %v629
        %v634 = vpack.c.b16 %v633, %v632
        %v636 = vsel %vm565, %v634, 0
        %638 = vmatprep.subr.bf16.mxu0 0
        %639 = vmatpush1.bf16.msra.mxu0 0
        %640 = vmatprep.subr.bf16.mxu0 0
        %641 = vmatpush1.bf16.msra.mxu0 0
        %642 = vmatprep.subr.bf16.mxu0 0
        %643 = vmatpush1.bf16.msra.mxu0 0
        %644 = vmatprep.subr.bf16.mxu0 0
        %645 = vmatpush1.bf16.msra.mxu0 0
        %646 = vmatprep.subr.bf16.mxu0 0
        %647 = vmatpush1.bf16.msra.mxu0 %v557
        %648 = vmatprep.subr.bf16.mxu0 0
        %649 = vmatpush1.bf16.msra.mxu0 %v556
        %650 = vmatprep.subr.bf16.mxu0 0
        %651 = vmatpush1.bf16.msra.mxu0 %v555
        %652 = vmatprep.subr.bf16.mxu0 0
        %653 = vmatpush1.bf16.msra.mxu0 %v554
        %654 = vmatprep.subr.bf16.mxu0 0
        %655 = vmatpush2.bf16.msra.mxu0 0
        %656 = vmatprep.subr.bf16.mxu0 0
        %657 = vmatpush2.bf16.msra.mxu0 0
        %658 = vmatprep.subr.bf16.mxu0 0
        %659 = vmatpush2.bf16.msra.mxu0 0
        %660 = vmatprep.subr.bf16.mxu0 0
        %661 = vmatpush2.bf16.msra.mxu0 0
        %662 = vmatprep.subr.bf16.mxu0 0
        %663 = vmatpush2.bf16.msra.mxu0 0
        %664 = vmatprep.subr.bf16.mxu0 0
        %665 = vmatpush2.bf16.msra.mxu0 0
        %666 = vmatprep.subr.bf16.mxu0 0
        %667 = vmatpush2.bf16.msra.mxu0 0
        %668 = vmatprep.subr.bf16.mxu0 0
        %669 = vmatpush2.bf16.msra.mxu0 0
        %670 = vmatprep.mubr.bf16.mxu0 0
        %671 = vmatmul.mubr.bf16.gmra.mxu0 %v636
        %v672 = vpop.f32.mrf.mxu0
        %v673 = vadd.f32 0.0, %v672
        %v674 = vpop.f32.mrf.mxu0
        %v675 = vpop.f32.mrf.mxu0
        %v676 = vadd.f32 0.0, %v675
        %v677 = vpop.f32.mrf.mxu0
        %678 = vdwg.mxu0
        %v679 = vpack.c.bf16 %v676, %v673
        %s680 = scalar_lea.vmem %s3, 64
        %v681 = vld [vmem:[%s680] sm:$0xf]
        %v682 = vld [vmem:[%s680 + $0x4] sm:$0xf]
        %v683 = vld [vmem:[%s680 + $0x8] sm:$0xf]
        %v684 = vld [vmem:[%s680 + $0xc] sm:$0xf]
        %v685 = vld [vmem:[%s680 + $0x10] sm:$0xf]
        %v686 = vld [vmem:[%s680 + $0x14] sm:$0xf]
        %v687 = vld [vmem:[%s680 + $0x18] sm:$0xf]
        %v688 = vld [vmem:[%s680 + $0x1c] sm:$0xf]
        %v689 = vld [vmem:[%s680 + $0x20] sm:$0xf]
        %v690 = vld [vmem:[%s680 + $0x24] sm:$0xf]
        %v691 = vld [vmem:[%s680 + $0x28] sm:$0xf]
        %v692 = vld [vmem:[%s680 + $0x2c] sm:$0xf]
        %v693 = vld [vmem:[%s680 + $0x30] sm:$0xf]
        %v694 = vld [vmem:[%s680 + $0x34] sm:$0xf]
        %v695 = vld [vmem:[%s680 + $0x38] sm:$0xf]
        %v696 = vld [vmem:[%s680 + $0x3c] sm:$0xf]
        %v713 = vunpack.c.l.b16 %v681
        %v714 = vunpack.c.l.b16 %v682
        %v715 = vunpack.c.l.b16 %v683
        %v716 = vunpack.c.l.b16 %v684
        %v717 = vunpack.c.l.b16 %v685
        %v718 = vunpack.c.l.b16 %v686
        %v719 = vunpack.c.l.b16 %v687
        %v720 = vunpack.c.l.b16 %v688
        %v721 = vunpack.c.l.b16 %v689
        %v722 = vunpack.c.l.b16 %v690
        %v723 = vunpack.c.l.b16 %v691
        %v724 = vunpack.c.l.b16 %v692
        %v725 = vunpack.c.l.b16 %v693
        %v726 = vunpack.c.l.b16 %v694
        %v727 = vunpack.c.l.b16 %v695
        %v728 = vunpack.c.l.b16 %v696
        %v729 = vpack.c.b16 %v714, %v713
        %v730 = vpack.c.b16 %v716, %v715
        %v731 = vpack.c.b16 %v718, %v717
        %v732 = vpack.c.b16 %v720, %v719
        %v733 = vpack.c.b16 %v722, %v721
        %v734 = vpack.c.b16 %v724, %v723
        %v735 = vpack.c.b16 %v726, %v725
        %v736 = vpack.c.b16 %v728, %v727
        %745 = vmatprep.subr.bf16.mxu0 0
        %746 = vmatpush1.bf16.msra.mxu0 %v736
        %747 = vmatprep.subr.bf16.mxu0 0
        %748 = vmatpush1.bf16.msra.mxu0 %v735
        %749 = vmatprep.subr.bf16.mxu0 0
        %750 = vmatpush1.bf16.msra.mxu0 %v734
        %751 = vmatprep.subr.bf16.mxu0 0
        %752 = vmatpush1.bf16.msra.mxu0 %v733
        %753 = vmatprep.subr.bf16.mxu0 0
        %754 = vmatpush1.bf16.msra.mxu0 %v732
        %755 = vmatprep.subr.bf16.mxu0 0
        %756 = vmatpush1.bf16.msra.mxu0 %v731
        %757 = vmatprep.subr.bf16.mxu0 0
        %758 = vmatpush1.bf16.msra.mxu0 %v730
        %759 = vmatprep.subr.bf16.mxu0 0
        %760 = vmatpush1.bf16.msra.mxu0 %v729
        %761 = vmatprep.subr.bf16.mxu0 0
        %762 = vmatpush2.bf16.msra.mxu0 0
        %763 = vmatprep.subr.bf16.mxu0 0
        %764 = vmatpush2.bf16.msra.mxu0 0
        %765 = vmatprep.subr.bf16.mxu0 0
        %766 = vmatpush2.bf16.msra.mxu0 0
        %767 = vmatprep.subr.bf16.mxu0 0
        %768 = vmatpush2.bf16.msra.mxu0 0
        %769 = vmatprep.subr.bf16.mxu0 0
        %770 = vmatpush2.bf16.msra.mxu0 0
        %771 = vmatprep.subr.bf16.mxu0 0
        %772 = vmatpush2.bf16.msra.mxu0 0
        %773 = vmatprep.subr.bf16.mxu0 0
        %774 = vmatpush2.bf16.msra.mxu0 0
        %775 = vmatprep.subr.bf16.mxu0 0
        %776 = vmatpush2.bf16.msra.mxu0 0
        %777 = vmatprep.mubr.bf16.mxu0 0
        %778 = vmatmul.mubr.bf16.gmra.mxu0 %v679
        %v779 = vpop.f32.mrf.mxu0
        %v780 = vadd.f32 0.0, %v779
        %v781 = vpop.f32.mrf.mxu0
        %v782 = vpop.f32.mrf.mxu0
        %v783 = vadd.f32 0.0, %v782
        %v784 = vpop.f32.mrf.mxu0
        %785 = vdwg.mxu0
        %v802 = vunpack.c.l.b16 %v611
        %v803 = vunpack.c.l.b16 %v612
        %v804 = vunpack.c.l.b16 %v613
        %v805 = vunpack.c.l.b16 %v614
        %v806 = vunpack.c.l.b16 %v615
        %v807 = vunpack.c.l.b16 %v616
        %v808 = vunpack.c.l.b16 %v617
        %v809 = vunpack.c.l.b16 %v618
        %v810 = vunpack.c.l.b16 %v619
        %v811 = vunpack.c.l.b16 %v620
        %v812 = vunpack.c.l.b16 %v621
        %v813 = vunpack.c.l.b16 %v622
        %v814 = vunpack.c.l.b16 %v623
        %v815 = vunpack.c.l.b16 %v624
        %v816 = vunpack.c.l.b16 %v625
        %v817 = vunpack.c.l.b16 %v626
        %v818 = vpack.c.b16 %v803, %v802
        %v819 = vpack.c.b16 %v805, %v804
        %v820 = vpack.c.b16 %v807, %v806
        %v821 = vpack.c.b16 %v809, %v808
        %v822 = vpack.c.b16 %v811, %v810
        %v823 = vpack.c.b16 %v813, %v812
        %v824 = vpack.c.b16 %v815, %v814
        %v825 = vpack.c.b16 %v817, %v816
        %834 = vmatprep.subr.bf16.mxu0 0
        %835 = vmatpush1.bf16.msra.mxu0 %v825
        %836 = vmatprep.subr.bf16.mxu0 0
        %837 = vmatpush1.bf16.msra.mxu0 %v824
        %838 = vmatprep.subr.bf16.mxu0 0
        %839 = vmatpush1.bf16.msra.mxu0 %v823
        %840 = vmatprep.subr.bf16.mxu0 0
        %841 = vmatpush1.bf16.msra.mxu0 %v822
        %842 = vmatprep.subr.bf16.mxu0 0
        %843 = vmatpush1.bf16.msra.mxu0 %v821
        %844 = vmatprep.subr.bf16.mxu0 0
        %845 = vmatpush1.bf16.msra.mxu0 %v820
        %846 = vmatprep.subr.bf16.mxu0 0
        %847 = vmatpush1.bf16.msra.mxu0 %v819
        %848 = vmatprep.subr.bf16.mxu0 0
        %849 = vmatpush1.bf16.msra.mxu0 %v818
        %850 = vmatprep.subr.bf16.mxu0 0
        %851 = vmatpush2.bf16.msra.mxu0 0
        %852 = vmatprep.subr.bf16.mxu0 0
        %853 = vmatpush2.bf16.msra.mxu0 0
        %854 = vmatprep.subr.bf16.mxu0 0
        %855 = vmatpush2.bf16.msra.mxu0 0
        %856 = vmatprep.subr.bf16.mxu0 0
        %857 = vmatpush2.bf16.msra.mxu0 0
        %858 = vmatprep.subr.bf16.mxu0 0
        %859 = vmatpush2.bf16.msra.mxu0 0
        %860 = vmatprep.subr.bf16.mxu0 0
        %861 = vmatpush2.bf16.msra.mxu0 0
        %862 = vmatprep.subr.bf16.mxu0 0
        %863 = vmatpush2.bf16.msra.mxu0 0
        %864 = vmatprep.subr.bf16.mxu0 0
        %865 = vmatpush2.bf16.msra.mxu0 0
        %866 = vmatprep.mubr.bf16.mxu0 0
        %867 = vmatmul.mubr.bf16.gmra.mxu0 %v610
        %v868 = vpop.f32.mrf.mxu0
        %v869 = vadd.f32 %v780, %v868
        %v870 = vpop.f32.mrf.mxu0
        %v871 = vpop.f32.mrf.mxu0
        %v872 = vadd.f32 %v783, %v871
        %v873 = vpop.f32.mrf.mxu0
        %874 = vdwg.mxu0
        %s875 = scalar_lea.vmem %s1, 16
        %v876 = vld [vmem:[%s875] sm:$0xf]
        %v877 = vld [vmem:[%s875 + $0x4] sm:$0xf]
        %v880 = vunpack.c.l.b16 %v876
        %v881 = vunpack.c.l.b16 %v877
        %v882 = vpack.c.b16 %v881, %v880
        %v884 = vsel %vm565, %v882, 0
        %886 = vmatprep.subr.bf16.mxu0 0
        %887 = vmatpush1.bf16.msra.mxu0 0
        %888 = vmatprep.subr.bf16.mxu0 0
        %889 = vmatpush1.bf16.msra.mxu0 0
        %890 = vmatprep.subr.bf16.mxu0 0
        %891 = vmatpush1.bf16.msra.mxu0 0
        %892 = vmatprep.subr.bf16.mxu0 0
        %893 = vmatpush1.bf16.msra.mxu0 0
        %894 = vmatprep.subr.bf16.mxu0 0
        %895 = vmatpush1.bf16.msra.mxu0 %v557
        %896 = vmatprep.subr.bf16.mxu0 0
        %897 = vmatpush1.bf16.msra.mxu0 %v556
        %898 = vmatprep.subr.bf16.mxu0 0
        %899 = vmatpush1.bf16.msra.mxu0 %v555
        %900 = vmatprep.subr.bf16.mxu0 0
        %901 = vmatpush1.bf16.msra.mxu0 %v554
        %902 = vmatprep.subr.bf16.mxu0 0
        %903 = vmatpush2.bf16.msra.mxu0 0
        %904 = vmatprep.subr.bf16.mxu0 0
        %905 = vmatpush2.bf16.msra.mxu0 0
        %906 = vmatprep.subr.bf16.mxu0 0
        %907 = vmatpush2.bf16.msra.mxu0 0
        %908 = vmatprep.subr.bf16.mxu0 0
        %909 = vmatpush2.bf16.msra.mxu0 0
        %910 = vmatprep.subr.bf16.mxu0 0
        %911 = vmatpush2.bf16.msra.mxu0 0
        %912 = vmatprep.subr.bf16.mxu0 0
        %913 = vmatpush2.bf16.msra.mxu0 0
        %914 = vmatprep.subr.bf16.mxu0 0
        %915 = vmatpush2.bf16.msra.mxu0 0
        %916 = vmatprep.subr.bf16.mxu0 0
        %917 = vmatpush2.bf16.msra.mxu0 0
        %918 = vmatprep.mubr.bf16.mxu0 0
        %919 = vmatmul.mubr.bf16.gmra.mxu0 %v884
        %v920 = vpop.f32.mrf.mxu0
        %v921 = vadd.f32 0.0, %v920
        %v922 = vpop.f32.mrf.mxu0
        %v923 = vpop.f32.mrf.mxu0
        %v924 = vadd.f32 0.0, %v923
        %v925 = vpop.f32.mrf.mxu0
        %926 = vdwg.mxu0
        %v927 = vpack.c.bf16 %v924, %v921
        %s928 = scalar_lea.vmem %s3, 128
        %v929 = vld [vmem:[%s928] sm:$0xf]
        %v930 = vld [vmem:[%s928 + $0x4] sm:$0xf]
        %v931 = vld [vmem:[%s928 + $0x8] sm:$0xf]
        %v932 = vld [vmem:[%s928 + $0xc] sm:$0xf]
        %v933 = vld [vmem:[%s928 + $0x10] sm:$0xf]
        %v934 = vld [vmem:[%s928 + $0x14] sm:$0xf]
        %v935 = vld [vmem:[%s928 + $0x18] sm:$0xf]
        %v936 = vld [vmem:[%s928 + $0x1c] sm:$0xf]
        %v937 = vld [vmem:[%s928 + $0x20] sm:$0xf]
        %v938 = vld [vmem:[%s928 + $0x24] sm:$0xf]
        %v939 = vld [vmem:[%s928 + $0x28] sm:$0xf]
        %v940 = vld [vmem:[%s928 + $0x2c] sm:$0xf]
        %v941 = vld [vmem:[%s928 + $0x30] sm:$0xf]
        %v942 = vld [vmem:[%s928 + $0x34] sm:$0xf]
        %v943 = vld [vmem:[%s928 + $0x38] sm:$0xf]
        %v944 = vld [vmem:[%s928 + $0x3c] sm:$0xf]
        %v961 = vunpack.c.l.b16 %v929
        %v962 = vunpack.c.l.b16 %v930
        %v963 = vunpack.c.l.b16 %v931
        %v964 = vunpack.c.l.b16 %v932
        %v965 = vunpack.c.l.b16 %v933
        %v966 = vunpack.c.l.b16 %v934
        %v967 = vunpack.c.l.b16 %v935
        %v968 = vunpack.c.l.b16 %v936
        %v969 = vunpack.c.l.b16 %v937
        %v970 = vunpack.c.l.b16 %v938
        %v971 = vunpack.c.l.b16 %v939
        %v972 = vunpack.c.l.b16 %v940
        %v973 = vunpack.c.l.b16 %v941
        %v974 = vunpack.c.l.b16 %v942
        %v975 = vunpack.c.l.b16 %v943
        %v976 = vunpack.c.l.b16 %v944
        %v977 = vpack.c.b16 %v962, %v961
        %v978 = vpack.c.b16 %v964, %v963
        %v979 = vpack.c.b16 %v966, %v965
        %v980 = vpack.c.b16 %v968, %v967
        %v981 = vpack.c.b16 %v970, %v969
        %v982 = vpack.c.b16 %v972, %v971
        %v983 = vpack.c.b16 %v974, %v973
        %v984 = vpack.c.b16 %v976, %v975
        %993 = vmatprep.subr.bf16.mxu0 0
        %994 = vmatpush1.bf16.msra.mxu0 %v984
        %995 = vmatprep.subr.bf16.mxu0 0
        %996 = vmatpush1.bf16.msra.mxu0 %v983
        %997 = vmatprep.subr.bf16.mxu0 0
        %998 = vmatpush1.bf16.msra.mxu0 %v982
        %999 = vmatprep.subr.bf16.mxu0 0
        %1000 = vmatpush1.bf16.msra.mxu0 %v981
        %1001 = vmatprep.subr.bf16.mxu0 0
        %1002 = vmatpush1.bf16.msra.mxu0 %v980
        %1003 = vmatprep.subr.bf16.mxu0 0
        %1004 = vmatpush1.bf16.msra.mxu0 %v979
        %1005 = vmatprep.subr.bf16.mxu0 0
        %1006 = vmatpush1.bf16.msra.mxu0 %v978
        %1007 = vmatprep.subr.bf16.mxu0 0
        %1008 = vmatpush1.bf16.msra.mxu0 %v977
        %1009 = vmatprep.subr.bf16.mxu0 0
        %1010 = vmatpush2.bf16.msra.mxu0 0
        %1011 = vmatprep.subr.bf16.mxu0 0
        %1012 = vmatpush2.bf16.msra.mxu0 0
        %1013 = vmatprep.subr.bf16.mxu0 0
        %1014 = vmatpush2.bf16.msra.mxu0 0
        %1015 = vmatprep.subr.bf16.mxu0 0
        %1016 = vmatpush2.bf16.msra.mxu0 0
        %1017 = vmatprep.subr.bf16.mxu0 0
        %1018 = vmatpush2.bf16.msra.mxu0 0
        %1019 = vmatprep.subr.bf16.mxu0 0
        %1020 = vmatpush2.bf16.msra.mxu0 0
        %1021 = vmatprep.subr.bf16.mxu0 0
        %1022 = vmatpush2.bf16.msra.mxu0 0
        %1023 = vmatprep.subr.bf16.mxu0 0
        %1024 = vmatpush2.bf16.msra.mxu0 0
        %1025 = vmatprep.mubr.bf16.mxu0 0
        %1026 = vmatmul.mubr.bf16.gmra.mxu0 %v927
        %v1027 = vpop.f32.mrf.mxu0
        %v1028 = vadd.f32 0.0, %v1027
        %v1029 = vpop.f32.mrf.mxu0
        %v1030 = vpop.f32.mrf.mxu0
        %v1031 = vadd.f32 0.0, %v1030
        %v1032 = vpop.f32.mrf.mxu0
        %1033 = vdwg.mxu0
        %v1034 = vadd.f32 %v869, %v1028
        %v1035 = vadd.f32 %v872, %v1031
        %s1036 = scalar_lea.vmem %s1, 24
        %v1037 = vld [vmem:[%s1036] sm:$0xf]
        %v1038 = vld [vmem:[%s1036 + $0x4] sm:$0xf]
        %v1041 = vunpack.c.l.b16 %v1037
        %v1042 = vunpack.c.l.b16 %v1038
        %v1043 = vpack.c.b16 %v1042, %v1041
        %v1045 = vsel %vm565, %v1043, 0
        %1047 = vmatprep.subr.bf16.mxu0 0
        %1048 = vmatpush1.bf16.msra.mxu0 0
        %1049 = vmatprep.subr.bf16.mxu0 0
        %1050 = vmatpush1.bf16.msra.mxu0 0
        %1051 = vmatprep.subr.bf16.mxu0 0
        %1052 = vmatpush1.bf16.msra.mxu0 0
        %1053 = vmatprep.subr.bf16.mxu0 0
        %1054 = vmatpush1.bf16.msra.mxu0 0
        %1055 = vmatprep.subr.bf16.mxu0 0
        %1056 = vmatpush1.bf16.msra.mxu0 %v557
        %1057 = vmatprep.subr.bf16.mxu0 0
        %1058 = vmatpush1.bf16.msra.mxu0 %v556
        %1059 = vmatprep.subr.bf16.mxu0 0
        %1060 = vmatpush1.bf16.msra.mxu0 %v555
        %1061 = vmatprep.subr.bf16.mxu0 0
        %1062 = vmatpush1.bf16.msra.mxu0 %v554
        %1063 = vmatprep.subr.bf16.mxu0 0
        %1064 = vmatpush2.bf16.msra.mxu0 0
        %1065 = vmatprep.subr.bf16.mxu0 0
        %1066 = vmatpush2.bf16.msra.mxu0 0
        %1067 = vmatprep.subr.bf16.mxu0 0
        %1068 = vmatpush2.bf16.msra.mxu0 0
        %1069 = vmatprep.subr.bf16.mxu0 0
        %1070 = vmatpush2.bf16.msra.mxu0 0
        %1071 = vmatprep.subr.bf16.mxu0 0
        %1072 = vmatpush2.bf16.msra.mxu0 0
        %1073 = vmatprep.subr.bf16.mxu0 0
        %1074 = vmatpush2.bf16.msra.mxu0 0
        %1075 = vmatprep.subr.bf16.mxu0 0
        %1076 = vmatpush2.bf16.msra.mxu0 0
        %1077 = vmatprep.subr.bf16.mxu0 0
        %1078 = vmatpush2.bf16.msra.mxu0 0
        %1079 = vmatprep.mubr.bf16.mxu0 0
        %1080 = vmatmul.mubr.bf16.gmra.mxu0 %v1045
        %v1081 = vpop.f32.mrf.mxu0
        %v1082 = vadd.f32 0.0, %v1081
        %v1083 = vpop.f32.mrf.mxu0
        %v1084 = vpop.f32.mrf.mxu0
        %v1085 = vadd.f32 0.0, %v1084
        %v1086 = vpop.f32.mrf.mxu0
        %1087 = vdwg.mxu0
        %v1088 = vpack.c.bf16 %v1085, %v1082
        %s1089 = scalar_lea.vmem %s3, 192
        %v1090 = vld [vmem:[%s1089] sm:$0xf]
        %v1091 = vld [vmem:[%s1089 + $0x4] sm:$0xf]
        %v1092 = vld [vmem:[%s1089 + $0x8] sm:$0xf]
        %v1093 = vld [vmem:[%s1089 + $0xc] sm:$0xf]
        %v1094 = vld [vmem:[%s1089 + $0x10] sm:$0xf]
        %v1095 = vld [vmem:[%s1089 + $0x14] sm:$0xf]
        %v1096 = vld [vmem:[%s1089 + $0x18] sm:$0xf]
        %v1097 = vld [vmem:[%s1089 + $0x1c] sm:$0xf]
        %v1098 = vld [vmem:[%s1089 + $0x20] sm:$0xf]
        %v1099 = vld [vmem:[%s1089 + $0x24] sm:$0xf]
        %v1100 = vld [vmem:[%s1089 + $0x28] sm:$0xf]
        %v1101 = vld [vmem:[%s1089 + $0x2c] sm:$0xf]
        %v1102 = vld [vmem:[%s1089 + $0x30] sm:$0xf]
        %v1103 = vld [vmem:[%s1089 + $0x34] sm:$0xf]
        %v1104 = vld [vmem:[%s1089 + $0x38] sm:$0xf]
        %v1105 = vld [vmem:[%s1089 + $0x3c] sm:$0xf]
        %v1122 = vunpack.c.l.b16 %v1090
        %v1123 = vunpack.c.l.b16 %v1091
        %v1124 = vunpack.c.l.b16 %v1092
        %v1125 = vunpack.c.l.b16 %v1093
        %v1126 = vunpack.c.l.b16 %v1094
        %v1127 = vunpack.c.l.b16 %v1095
        %v1128 = vunpack.c.l.b16 %v1096
        %v1129 = vunpack.c.l.b16 %v1097
        %v1130 = vunpack.c.l.b16 %v1098
        %v1131 = vunpack.c.l.b16 %v1099
        %v1132 = vunpack.c.l.b16 %v1100
        %v1133 = vunpack.c.l.b16 %v1101
        %v1134 = vunpack.c.l.b16 %v1102
        %v1135 = vunpack.c.l.b16 %v1103
        %v1136 = vunpack.c.l.b16 %v1104
        %v1137 = vunpack.c.l.b16 %v1105
        %v1138 = vpack.c.b16 %v1123, %v1122
        %v1139 = vpack.c.b16 %v1125, %v1124
        %v1140 = vpack.c.b16 %v1127, %v1126
        %v1141 = vpack.c.b16 %v1129, %v1128
        %v1142 = vpack.c.b16 %v1131, %v1130
        %v1143 = vpack.c.b16 %v1133, %v1132
        %v1144 = vpack.c.b16 %v1135, %v1134
        %v1145 = vpack.c.b16 %v1137, %v1136
        %1154 = vmatprep.subr.bf16.mxu0 0
        %1155 = vmatpush1.bf16.msra.mxu0 %v1145
        %1156 = vmatprep.subr.bf16.mxu0 0
        %1157 = vmatpush1.bf16.msra.mxu0 %v1144
        %1158 = vmatprep.subr.bf16.mxu0 0
        %1159 = vmatpush1.bf16.msra.mxu0 %v1143
        %1160 = vmatprep.subr.bf16.mxu0 0
        %1161 = vmatpush1.bf16.msra.mxu0 %v1142
        %1162 = vmatprep.subr.bf16.mxu0 0
        %1163 = vmatpush1.bf16.msra.mxu0 %v1141
        %1164 = vmatprep.subr.bf16.mxu0 0
        %1165 = vmatpush1.bf16.msra.mxu0 %v1140
        %1166 = vmatprep.subr.bf16.mxu0 0
        %1167 = vmatpush1.bf16.msra.mxu0 %v1139
        %1168 = vmatprep.subr.bf16.mxu0 0
        %1169 = vmatpush1.bf16.msra.mxu0 %v1138
        %1170 = vmatprep.subr.bf16.mxu0 0
        %1171 = vmatpush2.bf16.msra.mxu0 0
        %1172 = vmatprep.subr.bf16.mxu0 0
        %1173 = vmatpush2.bf16.msra.mxu0 0
        %1174 = vmatprep.subr.bf16.mxu0 0
        %1175 = vmatpush2.bf16.msra.mxu0 0
        %1176 = vmatprep.subr.bf16.mxu0 0
        %1177 = vmatpush2.bf16.msra.mxu0 0
        %1178 = vmatprep.subr.bf16.mxu0 0
        %1179 = vmatpush2.bf16.msra.mxu0 0
        %1180 = vmatprep.subr.bf16.mxu0 0
        %1181 = vmatpush2.bf16.msra.mxu0 0
        %1182 = vmatprep.subr.bf16.mxu0 0
        %1183 = vmatpush2.bf16.msra.mxu0 0
        %1184 = vmatprep.subr.bf16.mxu0 0
        %1185 = vmatpush2.bf16.msra.mxu0 0
        %1186 = vmatprep.mubr.bf16.mxu0 0
        %1187 = vmatmul.mubr.bf16.gmra.mxu0 %v1088
        %v1188 = vpop.f32.mrf.mxu0
        %v1189 = vadd.f32 0.0, %v1188
        %v1190 = vpop.f32.mrf.mxu0
        %v1191 = vpop.f32.mrf.mxu0
        %v1192 = vadd.f32 0.0, %v1191
        %v1193 = vpop.f32.mrf.mxu0
        %1194 = vdwg.mxu0
        %v1195 = vadd.f32 %v1034, %v1189
        %v1196 = vadd.f32 %v1035, %v1192
        %s1197 = scalar_lea.vmem %s1, 32
        %v1198 = vld [vmem:[%s1197] sm:$0xf]
        %v1199 = vld [vmem:[%s1197 + $0x4] sm:$0xf]
        %v1202 = vunpack.c.l.b16 %v1198
        %v1203 = vunpack.c.l.b16 %v1199
        %v1204 = vpack.c.b16 %v1203, %v1202
        %v1206 = vsel %vm565, %v1204, 0
        %1208 = vmatprep.subr.bf16.mxu0 0
        %1209 = vmatpush1.bf16.msra.mxu0 0
        %1210 = vmatprep.subr.bf16.mxu0 0
        %1211 = vmatpush1.bf16.msra.mxu0 0
        %1212 = vmatprep.subr.bf16.mxu0 0
        %1213 = vmatpush1.bf16.msra.mxu0 0
        %1214 = vmatprep.subr.bf16.mxu0 0
        %1215 = vmatpush1.bf16.msra.mxu0 0
        %1216 = vmatprep.subr.bf16.mxu0 0
        %1217 = vmatpush1.bf16.msra.mxu0 %v557
        %1218 = vmatprep.subr.bf16.mxu0 0
        %1219 = vmatpush1.bf16.msra.mxu0 %v556
        %1220 = vmatprep.subr.bf16.mxu0 0
        %1221 = vmatpush1.bf16.msra.mxu0 %v555
        %1222 = vmatprep.subr.bf16.mxu0 0
        %1223 = vmatpush1.bf16.msra.mxu0 %v554
        %1224 = vmatprep.subr.bf16.mxu0 0
        %1225 = vmatpush2.bf16.msra.mxu0 0
        %1226 = vmatprep.subr.bf16.mxu0 0
        %1227 = vmatpush2.bf16.msra.mxu0 0
        %1228 = vmatprep.subr.bf16.mxu0 0
        %1229 = vmatpush2.bf16.msra.mxu0 0
        %1230 = vmatprep.subr.bf16.mxu0 0
        %1231 = vmatpush2.bf16.msra.mxu0 0
        %1232 = vmatprep.subr.bf16.mxu0 0
        %1233 = vmatpush2.bf16.msra.mxu0 0
        %1234 = vmatprep.subr.bf16.mxu0 0
        %1235 = vmatpush2.bf16.msra.mxu0 0
        %1236 = vmatprep.subr.bf16.mxu0 0
        %1237 = vmatpush2.bf16.msra.mxu0 0
        %1238 = vmatprep.subr.bf16.mxu0 0
        %1239 = vmatpush2.bf16.msra.mxu0 0
        %1240 = vmatprep.mubr.bf16.mxu0 0
        %1241 = vmatmul.mubr.bf16.gmra.mxu0 %v1206
        %v1242 = vpop.f32.mrf.mxu0
        %v1243 = vadd.f32 0.0, %v1242
        %v1244 = vpop.f32.mrf.mxu0
        %v1245 = vpop.f32.mrf.mxu0
        %v1246 = vadd.f32 0.0, %v1245
        %v1247 = vpop.f32.mrf.mxu0
        %1248 = vdwg.mxu0
        %v1249 = vpack.c.bf16 %v1246, %v1243
        %s1250 = scalar_lea.vmem %s3, 256
        %v1251 = vld [vmem:[%s1250] sm:$0xf]
        %v1252 = vld [vmem:[%s1250 + $0x4] sm:$0xf]
        %v1253 = vld [vmem:[%s1250 + $0x8] sm:$0xf]
        %v1254 = vld [vmem:[%s1250 + $0xc] sm:$0xf]
        %v1255 = vld [vmem:[%s1250 + $0x10] sm:$0xf]
        %v1256 = vld [vmem:[%s1250 + $0x14] sm:$0xf]
        %v1257 = vld [vmem:[%s1250 + $0x18] sm:$0xf]
        %v1258 = vld [vmem:[%s1250 + $0x1c] sm:$0xf]
        %v1259 = vld [vmem:[%s1250 + $0x20] sm:$0xf]
        %v1260 = vld [vmem:[%s1250 + $0x24] sm:$0xf]
        %v1261 = vld [vmem:[%s1250 + $0x28] sm:$0xf]
        %v1262 = vld [vmem:[%s1250 + $0x2c] sm:$0xf]
        %v1263 = vld [vmem:[%s1250 + $0x30] sm:$0xf]
        %v1264 = vld [vmem:[%s1250 + $0x34] sm:$0xf]
        %v1265 = vld [vmem:[%s1250 + $0x38] sm:$0xf]
        %v1266 = vld [vmem:[%s1250 + $0x3c] sm:$0xf]
        %v1283 = vunpack.c.l.b16 %v1251
        %v1284 = vunpack.c.l.b16 %v1252
        %v1285 = vunpack.c.l.b16 %v1253
        %v1286 = vunpack.c.l.b16 %v1254
        %v1287 = vunpack.c.l.b16 %v1255
        %v1288 = vunpack.c.l.b16 %v1256
        %v1289 = vunpack.c.l.b16 %v1257
        %v1290 = vunpack.c.l.b16 %v1258
        %v1291 = vunpack.c.l.b16 %v1259
        %v1292 = vunpack.c.l.b16 %v1260
        %v1293 = vunpack.c.l.b16 %v1261
        %v1294 = vunpack.c.l.b16 %v1262
        %v1295 = vunpack.c.l.b16 %v1263
        %v1296 = vunpack.c.l.b16 %v1264
        %v1297 = vunpack.c.l.b16 %v1265
        %v1298 = vunpack.c.l.b16 %v1266
        %v1299 = vpack.c.b16 %v1284, %v1283
        %v1300 = vpack.c.b16 %v1286, %v1285
        %v1301 = vpack.c.b16 %v1288, %v1287
        %v1302 = vpack.c.b16 %v1290, %v1289
        %v1303 = vpack.c.b16 %v1292, %v1291
        %v1304 = vpack.c.b16 %v1294, %v1293
        %v1305 = vpack.c.b16 %v1296, %v1295
        %v1306 = vpack.c.b16 %v1298, %v1297
        %1315 = vmatprep.subr.bf16.mxu0 0
        %1316 = vmatpush1.bf16.msra.mxu0 %v1306
        %1317 = vmatprep.subr.bf16.mxu0 0
        %1318 = vmatpush1.bf16.msra.mxu0 %v1305
        %1319 = vmatprep.subr.bf16.mxu0 0
        %1320 = vmatpush1.bf16.msra.mxu0 %v1304
        %1321 = vmatprep.subr.bf16.mxu0 0
        %1322 = vmatpush1.bf16.msra.mxu0 %v1303
        %1323 = vmatprep.subr.bf16.mxu0 0
        %1324 = vmatpush1.bf16.msra.mxu0 %v1302
        %1325 = vmatprep.subr.bf16.mxu0 0
        %1326 = vmatpush1.bf16.msra.mxu0 %v1301
        %1327 = vmatprep.subr.bf16.mxu0 0
        %1328 = vmatpush1.bf16.msra.mxu0 %v1300
        %1329 = vmatprep.subr.bf16.mxu0 0
        %1330 = vmatpush1.bf16.msra.mxu0 %v1299
        %1331 = vmatprep.subr.bf16.mxu0 0
        %1332 = vmatpush2.bf16.msra.mxu0 0
        %1333 = vmatprep.subr.bf16.mxu0 0
        %1334 = vmatpush2.bf16.msra.mxu0 0
        %1335 = vmatprep.subr.bf16.mxu0 0
        %1336 = vmatpush2.bf16.msra.mxu0 0
        %1337 = vmatprep.subr.bf16.mxu0 0
        %1338 = vmatpush2.bf16.msra.mxu0 0
        %1339 = vmatprep.subr.bf16.mxu0 0
        %1340 = vmatpush2.bf16.msra.mxu0 0
        %1341 = vmatprep.subr.bf16.mxu0 0
        %1342 = vmatpush2.bf16.msra.mxu0 0
        %1343 = vmatprep.subr.bf16.mxu0 0
        %1344 = vmatpush2.bf16.msra.mxu0 0
        %1345 = vmatprep.subr.bf16.mxu0 0
        %1346 = vmatpush2.bf16.msra.mxu0 0
        %1347 = vmatprep.mubr.bf16.mxu0 0
        %1348 = vmatmul.mubr.bf16.gmra.mxu0 %v1249
        %v1349 = vpop.f32.mrf.mxu0
        %v1350 = vadd.f32 0.0, %v1349
        %v1351 = vpop.f32.mrf.mxu0
        %v1352 = vpop.f32.mrf.mxu0
        %v1353 = vadd.f32 0.0, %v1352
        %v1354 = vpop.f32.mrf.mxu0
        %1355 = vdwg.mxu0
        %v1356 = vadd.f32 %v1195, %v1350
        %v1357 = vadd.f32 %v1196, %v1353
        %s1358 = scalar_lea.vmem %s1, 40
        %v1359 = vld [vmem:[%s1358] sm:$0xf]
        %v1360 = vld [vmem:[%s1358 + $0x4] sm:$0xf]
        %v1363 = vunpack.c.l.b16 %v1359
        %v1364 = vunpack.c.l.b16 %v1360
        %v1365 = vpack.c.b16 %v1364, %v1363
        %v1367 = vsel %vm565, %v1365, 0
        %1369 = vmatprep.subr.bf16.mxu0 0
        %1370 = vmatpush1.bf16.msra.mxu0 0
        %1371 = vmatprep.subr.bf16.mxu0 0
        %1372 = vmatpush1.bf16.msra.mxu0 0
        %1373 = vmatprep.subr.bf16.mxu0 0
        %1374 = vmatpush1.bf16.msra.mxu0 0
        %1375 = vmatprep.subr.bf16.mxu0 0
        %1376 = vmatpush1.bf16.msra.mxu0 0
        %1377 = vmatprep.subr.bf16.mxu0 0
        %1378 = vmatpush1.bf16.msra.mxu0 %v557
        %1379 = vmatprep.subr.bf16.mxu0 0
        %1380 = vmatpush1.bf16.msra.mxu0 %v556
        %1381 = vmatprep.subr.bf16.mxu0 0
        %1382 = vmatpush1.bf16.msra.mxu0 %v555
        %1383 = vmatprep.subr.bf16.mxu0 0
        %1384 = vmatpush1.bf16.msra.mxu0 %v554
        %1385 = vmatprep.subr.bf16.mxu0 0
        %1386 = vmatpush2.bf16.msra.mxu0 0
        %1387 = vmatprep.subr.bf16.mxu0 0
        %1388 = vmatpush2.bf16.msra.mxu0 0
        %1389 = vmatprep.subr.bf16.mxu0 0
        %1390 = vmatpush2.bf16.msra.mxu0 0
        %1391 = vmatprep.subr.bf16.mxu0 0
        %1392 = vmatpush2.bf16.msra.mxu0 0
        %1393 = vmatprep.subr.bf16.mxu0 0
        %1394 = vmatpush2.bf16.msra.mxu0 0
        %1395 = vmatprep.subr.bf16.mxu0 0
        %1396 = vmatpush2.bf16.msra.mxu0 0
        %1397 = vmatprep.subr.bf16.mxu0 0
        %1398 = vmatpush2.bf16.msra.mxu0 0
        %1399 = vmatprep.subr.bf16.mxu0 0
        %1400 = vmatpush2.bf16.msra.mxu0 0
        %1401 = vmatprep.mubr.bf16.mxu0 0
        %1402 = vmatmul.mubr.bf16.gmra.mxu0 %v1367
        %v1403 = vpop.f32.mrf.mxu0
        %v1404 = vadd.f32 0.0, %v1403
        %v1405 = vpop.f32.mrf.mxu0
        %v1406 = vpop.f32.mrf.mxu0
        %v1407 = vadd.f32 0.0, %v1406
        %v1408 = vpop.f32.mrf.mxu0
        %1409 = vdwg.mxu0
        %v1410 = vpack.c.bf16 %v1407, %v1404
        %s1411 = scalar_lea.vmem %s3, 320
        %v1412 = vld [vmem:[%s1411] sm:$0xf]
        %v1413 = vld [vmem:[%s1411 + $0x4] sm:$0xf]
        %v1414 = vld [vmem:[%s1411 + $0x8] sm:$0xf]
        %v1415 = vld [vmem:[%s1411 + $0xc] sm:$0xf]
        %v1416 = vld [vmem:[%s1411 + $0x10] sm:$0xf]
        %v1417 = vld [vmem:[%s1411 + $0x14] sm:$0xf]
        %v1418 = vld [vmem:[%s1411 + $0x18] sm:$0xf]
        %v1419 = vld [vmem:[%s1411 + $0x1c] sm:$0xf]
        %v1420 = vld [vmem:[%s1411 + $0x20] sm:$0xf]
        %v1421 = vld [vmem:[%s1411 + $0x24] sm:$0xf]
        %v1422 = vld [vmem:[%s1411 + $0x28] sm:$0xf]
        %v1423 = vld [vmem:[%s1411 + $0x2c] sm:$0xf]
        %v1424 = vld [vmem:[%s1411 + $0x30] sm:$0xf]
        %v1425 = vld [vmem:[%s1411 + $0x34] sm:$0xf]
        %v1426 = vld [vmem:[%s1411 + $0x38] sm:$0xf]
        %v1427 = vld [vmem:[%s1411 + $0x3c] sm:$0xf]
        %v1444 = vunpack.c.l.b16 %v1412
        %v1445 = vunpack.c.l.b16 %v1413
        %v1446 = vunpack.c.l.b16 %v1414
        %v1447 = vunpack.c.l.b16 %v1415
        %v1448 = vunpack.c.l.b16 %v1416
        %v1449 = vunpack.c.l.b16 %v1417
        %v1450 = vunpack.c.l.b16 %v1418
        %v1451 = vunpack.c.l.b16 %v1419
        %v1452 = vunpack.c.l.b16 %v1420
        %v1453 = vunpack.c.l.b16 %v1421
        %v1454 = vunpack.c.l.b16 %v1422
        %v1455 = vunpack.c.l.b16 %v1423
        %v1456 = vunpack.c.l.b16 %v1424
        %v1457 = vunpack.c.l.b16 %v1425
        %v1458 = vunpack.c.l.b16 %v1426
        %v1459 = vunpack.c.l.b16 %v1427
        %v1460 = vpack.c.b16 %v1445, %v1444
        %v1461 = vpack.c.b16 %v1447, %v1446
        %v1462 = vpack.c.b16 %v1449, %v1448
        %v1463 = vpack.c.b16 %v1451, %v1450
        %v1464 = vpack.c.b16 %v1453, %v1452
        %v1465 = vpack.c.b16 %v1455, %v1454
        %v1466 = vpack.c.b16 %v1457, %v1456
        %v1467 = vpack.c.b16 %v1459, %v1458
        %1476 = vmatprep.subr.bf16.mxu0 0
        %1477 = vmatpush1.bf16.msra.mxu0 %v1467
        %1478 = vmatprep.subr.bf16.mxu0 0
        %1479 = vmatpush1.bf16.msra.mxu0 %v1466
        %1480 = vmatprep.subr.bf16.mxu0 0
        %1481 = vmatpush1.bf16.msra.mxu0 %v1465
        %1482 = vmatprep.subr.bf16.mxu0 0
        %1483 = vmatpush1.bf16.msra.mxu0 %v1464
        %1484 = vmatprep.subr.bf16.mxu0 0
        %1485 = vmatpush1.bf16.msra.mxu0 %v1463
        %1486 = vmatprep.subr.bf16.mxu0 0
        %1487 = vmatpush1.bf16.msra.mxu0 %v1462
        %1488 = vmatprep.subr.bf16.mxu0 0
        %1489 = vmatpush1.bf16.msra.mxu0 %v1461
        %1490 = vmatprep.subr.bf16.mxu0 0
        %1491 = vmatpush1.bf16.msra.mxu0 %v1460
        %1492 = vmatprep.subr.bf16.mxu0 0
        %1493 = vmatpush2.bf16.msra.mxu0 0
        %1494 = vmatprep.subr.bf16.mxu0 0
        %1495 = vmatpush2.bf16.msra.mxu0 0
        %1496 = vmatprep.subr.bf16.mxu0 0
        %1497 = vmatpush2.bf16.msra.mxu0 0
        %1498 = vmatprep.subr.bf16.mxu0 0
        %1499 = vmatpush2.bf16.msra.mxu0 0
        %1500 = vmatprep.subr.bf16.mxu0 0
        %1501 = vmatpush2.bf16.msra.mxu0 0
        %1502 = vmatprep.subr.bf16.mxu0 0
        %1503 = vmatpush2.bf16.msra.mxu0 0
        %1504 = vmatprep.subr.bf16.mxu0 0
        %1505 = vmatpush2.bf16.msra.mxu0 0
        %1506 = vmatprep.subr.bf16.mxu0 0
        %1507 = vmatpush2.bf16.msra.mxu0 0
        %1508 = vmatprep.mubr.bf16.mxu0 0
        %1509 = vmatmul.mubr.bf16.gmra.mxu0 %v1410
        %v1510 = vpop.f32.mrf.mxu0
        %v1511 = vadd.f32 0.0, %v1510
        %v1512 = vpop.f32.mrf.mxu0
        %v1513 = vpop.f32.mrf.mxu0
        %v1514 = vadd.f32 0.0, %v1513
        %v1515 = vpop.f32.mrf.mxu0
        %1516 = vdwg.mxu0
        %v1517 = vadd.f32 %v1356, %v1511
        %v1518 = vadd.f32 %v1357, %v1514
        %s1519 = scalar_lea.vmem %s1, 48
        %v1520 = vld [vmem:[%s1519] sm:$0xf]
        %v1521 = vld [vmem:[%s1519 + $0x4] sm:$0xf]
        %v1524 = vunpack.c.l.b16 %v1520
        %v1525 = vunpack.c.l.b16 %v1521
        %v1526 = vpack.c.b16 %v1525, %v1524
        %v1528 = vsel %vm565, %v1526, 0
        %1530 = vmatprep.subr.bf16.mxu0 0
        %1531 = vmatpush1.bf16.msra.mxu0 0
        %1532 = vmatprep.subr.bf16.mxu0 0
        %1533 = vmatpush1.bf16.msra.mxu0 0
        %1534 = vmatprep.subr.bf16.mxu0 0
        %1535 = vmatpush1.bf16.msra.mxu0 0
        %1536 = vmatprep.subr.bf16.mxu0 0
        %1537 = vmatpush1.bf16.msra.mxu0 0
        %1538 = vmatprep.subr.bf16.mxu0 0
        %1539 = vmatpush1.bf16.msra.mxu0 %v557
        %1540 = vmatprep.subr.bf16.mxu0 0
        %1541 = vmatpush1.bf16.msra.mxu0 %v556
        %1542 = vmatprep.subr.bf16.mxu0 0
        %1543 = vmatpush1.bf16.msra.mxu0 %v555
        %1544 = vmatprep.subr.bf16.mxu0 0
        %1545 = vmatpush1.bf16.msra.mxu0 %v554
        %1546 = vmatprep.subr.bf16.mxu0 0
        %1547 = vmatpush2.bf16.msra.mxu0 0
        %1548 = vmatprep.subr.bf16.mxu0 0
        %1549 = vmatpush2.bf16.msra.mxu0 0
        %1550 = vmatprep.subr.bf16.mxu0 0
        %1551 = vmatpush2.bf16.msra.mxu0 0
        %1552 = vmatprep.subr.bf16.mxu0 0
        %1553 = vmatpush2.bf16.msra.mxu0 0
        %1554 = vmatprep.subr.bf16.mxu0 0
        %1555 = vmatpush2.bf16.msra.mxu0 0
        %1556 = vmatprep.subr.bf16.mxu0 0
        %1557 = vmatpush2.bf16.msra.mxu0 0
        %1558 = vmatprep.subr.bf16.mxu0 0
        %1559 = vmatpush2.bf16.msra.mxu0 0
        %1560 = vmatprep.subr.bf16.mxu0 0
        %1561 = vmatpush2.bf16.msra.mxu0 0
        %1562 = vmatprep.mubr.bf16.mxu0 0
        %1563 = vmatmul.mubr.bf16.gmra.mxu0 %v1528
        %v1564 = vpop.f32.mrf.mxu0
        %v1565 = vadd.f32 0.0, %v1564
        %v1566 = vpop.f32.mrf.mxu0
        %v1567 = vpop.f32.mrf.mxu0
        %v1568 = vadd.f32 0.0, %v1567
        %v1569 = vpop.f32.mrf.mxu0
        %1570 = vdwg.mxu0
        %v1571 = vpack.c.bf16 %v1568, %v1565
        %s1572 = scalar_lea.vmem %s3, 384
        %v1573 = vld [vmem:[%s1572] sm:$0xf]
        %v1574 = vld [vmem:[%s1572 + $0x4] sm:$0xf]
        %v1575 = vld [vmem:[%s1572 + $0x8] sm:$0xf]
        %v1576 = vld [vmem:[%s1572 + $0xc] sm:$0xf]
        %v1577 = vld [vmem:[%s1572 + $0x10] sm:$0xf]
        %v1578 = vld [vmem:[%s1572 + $0x14] sm:$0xf]
        %v1579 = vld [vmem:[%s1572 + $0x18] sm:$0xf]
        %v1580 = vld [vmem:[%s1572 + $0x1c] sm:$0xf]
        %v1581 = vld [vmem:[%s1572 + $0x20] sm:$0xf]
        %v1582 = vld [vmem:[%s1572 + $0x24] sm:$0xf]
        %v1583 = vld [vmem:[%s1572 + $0x28] sm:$0xf]
        %v1584 = vld [vmem:[%s1572 + $0x2c] sm:$0xf]
        %v1585 = vld [vmem:[%s1572 + $0x30] sm:$0xf]
        %v1586 = vld [vmem:[%s1572 + $0x34] sm:$0xf]
        %v1587 = vld [vmem:[%s1572 + $0x38] sm:$0xf]
        %v1588 = vld [vmem:[%s1572 + $0x3c] sm:$0xf]
        %v1605 = vunpack.c.l.b16 %v1573
        %v1606 = vunpack.c.l.b16 %v1574
        %v1607 = vunpack.c.l.b16 %v1575
        %v1608 = vunpack.c.l.b16 %v1576
        %v1609 = vunpack.c.l.b16 %v1577
        %v1610 = vunpack.c.l.b16 %v1578
        %v1611 = vunpack.c.l.b16 %v1579
        %v1612 = vunpack.c.l.b16 %v1580
        %v1613 = vunpack.c.l.b16 %v1581
        %v1614 = vunpack.c.l.b16 %v1582
        %v1615 = vunpack.c.l.b16 %v1583
        %v1616 = vunpack.c.l.b16 %v1584
        %v1617 = vunpack.c.l.b16 %v1585
        %v1618 = vunpack.c.l.b16 %v1586
        %v1619 = vunpack.c.l.b16 %v1587
        %v1620 = vunpack.c.l.b16 %v1588
        %v1621 = vpack.c.b16 %v1606, %v1605
        %v1622 = vpack.c.b16 %v1608, %v1607
        %v1623 = vpack.c.b16 %v1610, %v1609
        %v1624 = vpack.c.b16 %v1612, %v1611
        %v1625 = vpack.c.b16 %v1614, %v1613
        %v1626 = vpack.c.b16 %v1616, %v1615
        %v1627 = vpack.c.b16 %v1618, %v1617
        %v1628 = vpack.c.b16 %v1620, %v1619
        %1637 = vmatprep.subr.bf16.mxu0 0
        %1638 = vmatpush1.bf16.msra.mxu0 %v1628
        %1639 = vmatprep.subr.bf16.mxu0 0
        %1640 = vmatpush1.bf16.msra.mxu0 %v1627
        %1641 = vmatprep.subr.bf16.mxu0 0
        %1642 = vmatpush1.bf16.msra.mxu0 %v1626
        %1643 = vmatprep.subr.bf16.mxu0 0
        %1644 = vmatpush1.bf16.msra.mxu0 %v1625
        %1645 = vmatprep.subr.bf16.mxu0 0
        %1646 = vmatpush1.bf16.msra.mxu0 %v1624
        %1647 = vmatprep.subr.bf16.mxu0 0
        %1648 = vmatpush1.bf16.msra.mxu0 %v1623
        %1649 = vmatprep.subr.bf16.mxu0 0
        %1650 = vmatpush1.bf16.msra.mxu0 %v1622
        %1651 = vmatprep.subr.bf16.mxu0 0
        %1652 = vmatpush1.bf16.msra.mxu0 %v1621
        %1653 = vmatprep.subr.bf16.mxu0 0
        %1654 = vmatpush2.bf16.msra.mxu0 0
        %1655 = vmatprep.subr.bf16.mxu0 0
        %1656 = vmatpush2.bf16.msra.mxu0 0
        %1657 = vmatprep.subr.bf16.mxu0 0
        %1658 = vmatpush2.bf16.msra.mxu0 0
        %1659 = vmatprep.subr.bf16.mxu0 0
        %1660 = vmatpush2.bf16.msra.mxu0 0
        %1661 = vmatprep.subr.bf16.mxu0 0
        %1662 = vmatpush2.bf16.msra.mxu0 0
        %1663 = vmatprep.subr.bf16.mxu0 0
        %1664 = vmatpush2.bf16.msra.mxu0 0
        %1665 = vmatprep.subr.bf16.mxu0 0
        %1666 = vmatpush2.bf16.msra.mxu0 0
        %1667 = vmatprep.subr.bf16.mxu0 0
        %1668 = vmatpush2.bf16.msra.mxu0 0
        %1669 = vmatprep.mubr.bf16.mxu0 0
        %1670 = vmatmul.mubr.bf16.gmra.mxu0 %v1571
        %v1671 = vpop.f32.mrf.mxu0
        %v1672 = vadd.f32 0.0, %v1671
        %v1673 = vpop.f32.mrf.mxu0
        %v1674 = vpop.f32.mrf.mxu0
        %v1675 = vadd.f32 0.0, %v1674
        %v1676 = vpop.f32.mrf.mxu0
        %1677 = vdwg.mxu0
        %v1678 = vadd.f32 %v1517, %v1672
        %v1679 = vadd.f32 %v1518, %v1675
        %s1680 = scalar_lea.vmem %s1, 56
        %v1681 = vld [vmem:[%s1680] sm:$0xf]
        %v1682 = vld [vmem:[%s1680 + $0x4] sm:$0xf]
        %v1685 = vunpack.c.l.b16 %v1681
        %v1686 = vunpack.c.l.b16 %v1682
        %v1687 = vpack.c.b16 %v1686, %v1685
        %v1689 = vsel %vm565, %v1687, 0
        %1691 = vmatprep.subr.bf16.mxu0 0
        %1692 = vmatpush1.bf16.msra.mxu0 0
        %1693 = vmatprep.subr.bf16.mxu0 0
        %1694 = vmatpush1.bf16.msra.mxu0 0
        %1695 = vmatprep.subr.bf16.mxu0 0
        %1696 = vmatpush1.bf16.msra.mxu0 0
        %1697 = vmatprep.subr.bf16.mxu0 0
        %1698 = vmatpush1.bf16.msra.mxu0 0
        %1699 = vmatprep.subr.bf16.mxu0 0
        %1700 = vmatpush1.bf16.msra.mxu0 %v557
        %1701 = vmatprep.subr.bf16.mxu0 0
        %1702 = vmatpush1.bf16.msra.mxu0 %v556
        %1703 = vmatprep.subr.bf16.mxu0 0
        %1704 = vmatpush1.bf16.msra.mxu0 %v555
        %1705 = vmatprep.subr.bf16.mxu0 0
        %1706 = vmatpush1.bf16.msra.mxu0 %v554
        %1707 = vmatprep.subr.bf16.mxu0 0
        %1708 = vmatpush2.bf16.msra.mxu0 0
        %1709 = vmatprep.subr.bf16.mxu0 0
        %1710 = vmatpush2.bf16.msra.mxu0 0
        %1711 = vmatprep.subr.bf16.mxu0 0
        %1712 = vmatpush2.bf16.msra.mxu0 0
        %1713 = vmatprep.subr.bf16.mxu0 0
        %1714 = vmatpush2.bf16.msra.mxu0 0
        %1715 = vmatprep.subr.bf16.mxu0 0
        %1716 = vmatpush2.bf16.msra.mxu0 0
        %1717 = vmatprep.subr.bf16.mxu0 0
        %1718 = vmatpush2.bf16.msra.mxu0 0
        %1719 = vmatprep.subr.bf16.mxu0 0
        %1720 = vmatpush2.bf16.msra.mxu0 0
        %1721 = vmatprep.subr.bf16.mxu0 0
        %1722 = vmatpush2.bf16.msra.mxu0 0
        %1723 = vmatprep.mubr.bf16.mxu0 0
        %1724 = vmatmul.mubr.bf16.gmra.mxu0 %v1689
        %v1725 = vpop.f32.mrf.mxu0
        %v1726 = vadd.f32 0.0, %v1725
        %v1727 = vpop.f32.mrf.mxu0
        %v1728 = vpop.f32.mrf.mxu0
        %v1729 = vadd.f32 0.0, %v1728
        %v1730 = vpop.f32.mrf.mxu0
        %1731 = vdwg.mxu0
        %v1732 = vpack.c.bf16 %v1729, %v1726
        %s1733 = scalar_lea.vmem %s3, 448
        %v1734 = vld [vmem:[%s1733] sm:$0xf]
        %v1735 = vld [vmem:[%s1733 + $0x4] sm:$0xf]
        %v1736 = vld [vmem:[%s1733 + $0x8] sm:$0xf]
        %v1737 = vld [vmem:[%s1733 + $0xc] sm:$0xf]
        %v1738 = vld [vmem:[%s1733 + $0x10] sm:$0xf]
        %v1739 = vld [vmem:[%s1733 + $0x14] sm:$0xf]
        %v1740 = vld [vmem:[%s1733 + $0x18] sm:$0xf]
        %v1741 = vld [vmem:[%s1733 + $0x1c] sm:$0xf]
        %v1742 = vld [vmem:[%s1733 + $0x20] sm:$0xf]
        %v1743 = vld [vmem:[%s1733 + $0x24] sm:$0xf]
        %v1744 = vld [vmem:[%s1733 + $0x28] sm:$0xf]
        %v1745 = vld [vmem:[%s1733 + $0x2c] sm:$0xf]
        %v1746 = vld [vmem:[%s1733 + $0x30] sm:$0xf]
        %v1747 = vld [vmem:[%s1733 + $0x34] sm:$0xf]
        %v1748 = vld [vmem:[%s1733 + $0x38] sm:$0xf]
        %v1749 = vld [vmem:[%s1733 + $0x3c] sm:$0xf]
        %v1766 = vunpack.c.l.b16 %v1734
        %v1767 = vunpack.c.l.b16 %v1735
        %v1768 = vunpack.c.l.b16 %v1736
        %v1769 = vunpack.c.l.b16 %v1737
        %v1770 = vunpack.c.l.b16 %v1738
        %v1771 = vunpack.c.l.b16 %v1739
        %v1772 = vunpack.c.l.b16 %v1740
        %v1773 = vunpack.c.l.b16 %v1741
        %v1774 = vunpack.c.l.b16 %v1742
        %v1775 = vunpack.c.l.b16 %v1743
        %v1776 = vunpack.c.l.b16 %v1744
        %v1777 = vunpack.c.l.b16 %v1745
        %v1778 = vunpack.c.l.b16 %v1746
        %v1779 = vunpack.c.l.b16 %v1747
        %v1780 = vunpack.c.l.b16 %v1748
        %v1781 = vunpack.c.l.b16 %v1749
        %v1782 = vpack.c.b16 %v1767, %v1766
        %v1783 = vpack.c.b16 %v1769, %v1768
        %v1784 = vpack.c.b16 %v1771, %v1770
        %v1785 = vpack.c.b16 %v1773, %v1772
        %v1786 = vpack.c.b16 %v1775, %v1774
        %v1787 = vpack.c.b16 %v1777, %v1776
        %v1788 = vpack.c.b16 %v1779, %v1778
        %v1789 = vpack.c.b16 %v1781, %v1780
        %1798 = vmatprep.subr.bf16.mxu0 0
        %1799 = vmatpush1.bf16.msra.mxu0 %v1789
        %1800 = vmatprep.subr.bf16.mxu0 0
        %1801 = vmatpush1.bf16.msra.mxu0 %v1788
        %1802 = vmatprep.subr.bf16.mxu0 0
        %1803 = vmatpush1.bf16.msra.mxu0 %v1787
        %1804 = vmatprep.subr.bf16.mxu0 0
        %1805 = vmatpush1.bf16.msra.mxu0 %v1786
        %1806 = vmatprep.subr.bf16.mxu0 0
        %1807 = vmatpush1.bf16.msra.mxu0 %v1785
        %1808 = vmatprep.subr.bf16.mxu0 0
        %1809 = vmatpush1.bf16.msra.mxu0 %v1784
        %1810 = vmatprep.subr.bf16.mxu0 0
        %1811 = vmatpush1.bf16.msra.mxu0 %v1783
        %1812 = vmatprep.subr.bf16.mxu0 0
        %1813 = vmatpush1.bf16.msra.mxu0 %v1782
        %1814 = vmatprep.subr.bf16.mxu0 0
        %1815 = vmatpush2.bf16.msra.mxu0 0
        %1816 = vmatprep.subr.bf16.mxu0 0
        %1817 = vmatpush2.bf16.msra.mxu0 0
        %1818 = vmatprep.subr.bf16.mxu0 0
        %1819 = vmatpush2.bf16.msra.mxu0 0
        %1820 = vmatprep.subr.bf16.mxu0 0
        %1821 = vmatpush2.bf16.msra.mxu0 0
        %1822 = vmatprep.subr.bf16.mxu0 0
        %1823 = vmatpush2.bf16.msra.mxu0 0
        %1824 = vmatprep.subr.bf16.mxu0 0
        %1825 = vmatpush2.bf16.msra.mxu0 0
        %1826 = vmatprep.subr.bf16.mxu0 0
        %1827 = vmatpush2.bf16.msra.mxu0 0
        %1828 = vmatprep.subr.bf16.mxu0 0
        %1829 = vmatpush2.bf16.msra.mxu0 0
        %1830 = vmatprep.mubr.bf16.mxu0 0
        %1831 = vmatmul.mubr.bf16.gmra.mxu0 %v1732
        %v1832 = vpop.f32.mrf.mxu0
        %v1833 = vadd.f32 0.0, %v1832
        %v1834 = vpop.f32.mrf.mxu0
        %v1835 = vpop.f32.mrf.mxu0
        %v1836 = vadd.f32 0.0, %v1835
        %v1837 = vpop.f32.mrf.mxu0
        %1838 = vdwg.mxu0
        %v1839 = vadd.f32 %v1678, %v1833
        %v1840 = vadd.f32 %v1679, %v1836
        %s1841 = scalar_lea.vmem %s1, 64
        %v1842 = vld [vmem:[%s1841] sm:$0xf]
        %v1843 = vld [vmem:[%s1841 + $0x4] sm:$0xf]
        %v1846 = vunpack.c.l.b16 %v1842
        %v1847 = vunpack.c.l.b16 %v1843
        %v1848 = vpack.c.b16 %v1847, %v1846
        %v1850 = vsel %vm565, %v1848, 0
        %1852 = vmatprep.subr.bf16.mxu0 0
        %1853 = vmatpush1.bf16.msra.mxu0 0
        %1854 = vmatprep.subr.bf16.mxu0 0
        %1855 = vmatpush1.bf16.msra.mxu0 0
        %1856 = vmatprep.subr.bf16.mxu0 0
        %1857 = vmatpush1.bf16.msra.mxu0 0
        %1858 = vmatprep.subr.bf16.mxu0 0
        %1859 = vmatpush1.bf16.msra.mxu0 0
        %1860 = vmatprep.subr.bf16.mxu0 0
        %1861 = vmatpush1.bf16.msra.mxu0 %v557
        %1862 = vmatprep.subr.bf16.mxu0 0
        %1863 = vmatpush1.bf16.msra.mxu0 %v556
        %1864 = vmatprep.subr.bf16.mxu0 0
        %1865 = vmatpush1.bf16.msra.mxu0 %v555
        %1866 = vmatprep.subr.bf16.mxu0 0
        %1867 = vmatpush1.bf16.msra.mxu0 %v554
        %1868 = vmatprep.subr.bf16.mxu0 0
        %1869 = vmatpush2.bf16.msra.mxu0 0
        %1870 = vmatprep.subr.bf16.mxu0 0
        %1871 = vmatpush2.bf16.msra.mxu0 0
        %1872 = vmatprep.subr.bf16.mxu0 0
        %1873 = vmatpush2.bf16.msra.mxu0 0
        %1874 = vmatprep.subr.bf16.mxu0 0
        %1875 = vmatpush2.bf16.msra.mxu0 0
        %1876 = vmatprep.subr.bf16.mxu0 0
        %1877 = vmatpush2.bf16.msra.mxu0 0
        %1878 = vmatprep.subr.bf16.mxu0 0
        %1879 = vmatpush2.bf16.msra.mxu0 0
        %1880 = vmatprep.subr.bf16.mxu0 0
        %1881 = vmatpush2.bf16.msra.mxu0 0
        %1882 = vmatprep.subr.bf16.mxu0 0
        %1883 = vmatpush2.bf16.msra.mxu0 0
        %1884 = vmatprep.mubr.bf16.mxu0 0
        %1885 = vmatmul.mubr.bf16.gmra.mxu0 %v1850
        %v1886 = vpop.f32.mrf.mxu0
        %v1887 = vadd.f32 0.0, %v1886
        %v1888 = vpop.f32.mrf.mxu0
        %v1889 = vpop.f32.mrf.mxu0
        %v1890 = vadd.f32 0.0, %v1889
        %v1891 = vpop.f32.mrf.mxu0
        %1892 = vdwg.mxu0
        %v1893 = vpack.c.bf16 %v1890, %v1887
        %s1894 = scalar_lea.vmem %s3, 512
        %v1895 = vld [vmem:[%s1894] sm:$0xf]
        %v1896 = vld [vmem:[%s1894 + $0x4] sm:$0xf]
        %v1897 = vld [vmem:[%s1894 + $0x8] sm:$0xf]
        %v1898 = vld [vmem:[%s1894 + $0xc] sm:$0xf]
        %v1899 = vld [vmem:[%s1894 + $0x10] sm:$0xf]
        %v1900 = vld [vmem:[%s1894 + $0x14] sm:$0xf]
        %v1901 = vld [vmem:[%s1894 + $0x18] sm:$0xf]
        %v1902 = vld [vmem:[%s1894 + $0x1c] sm:$0xf]
        %v1903 = vld [vmem:[%s1894 + $0x20] sm:$0xf]
        %v1904 = vld [vmem:[%s1894 + $0x24] sm:$0xf]
        %v1905 = vld [vmem:[%s1894 + $0x28] sm:$0xf]
        %v1906 = vld [vmem:[%s1894 + $0x2c] sm:$0xf]
        %v1907 = vld [vmem:[%s1894 + $0x30] sm:$0xf]
        %v1908 = vld [vmem:[%s1894 + $0x34] sm:$0xf]
        %v1909 = vld [vmem:[%s1894 + $0x38] sm:$0xf]
        %v1910 = vld [vmem:[%s1894 + $0x3c] sm:$0xf]
        %v1927 = vunpack.c.l.b16 %v1895
        %v1928 = vunpack.c.l.b16 %v1896
        %v1929 = vunpack.c.l.b16 %v1897
        %v1930 = vunpack.c.l.b16 %v1898
        %v1931 = vunpack.c.l.b16 %v1899
        %v1932 = vunpack.c.l.b16 %v1900
        %v1933 = vunpack.c.l.b16 %v1901
        %v1934 = vunpack.c.l.b16 %v1902
        %v1935 = vunpack.c.l.b16 %v1903
        %v1936 = vunpack.c.l.b16 %v1904
        %v1937 = vunpack.c.l.b16 %v1905
        %v1938 = vunpack.c.l.b16 %v1906
        %v1939 = vunpack.c.l.b16 %v1907
        %v1940 = vunpack.c.l.b16 %v1908
        %v1941 = vunpack.c.l.b16 %v1909
        %v1942 = vunpack.c.l.b16 %v1910
        %v1943 = vpack.c.b16 %v1928, %v1927
        %v1944 = vpack.c.b16 %v1930, %v1929
        %v1945 = vpack.c.b16 %v1932, %v1931
        %v1946 = vpack.c.b16 %v1934, %v1933
        %v1947 = vpack.c.b16 %v1936, %v1935
        %v1948 = vpack.c.b16 %v1938, %v1937
        %v1949 = vpack.c.b16 %v1940, %v1939
        %v1950 = vpack.c.b16 %v1942, %v1941
        %1959 = vmatprep.subr.bf16.mxu0 0
        %1960 = vmatpush1.bf16.msra.mxu0 %v1950
        %1961 = vmatprep.subr.bf16.mxu0 0
        %1962 = vmatpush1.bf16.msra.mxu0 %v1949
        %1963 = vmatprep.subr.bf16.mxu0 0
        %1964 = vmatpush1.bf16.msra.mxu0 %v1948
        %1965 = vmatprep.subr.bf16.mxu0 0
        %1966 = vmatpush1.bf16.msra.mxu0 %v1947
        %1967 = vmatprep.subr.bf16.mxu0 0
        %1968 = vmatpush1.bf16.msra.mxu0 %v1946
        %1969 = vmatprep.subr.bf16.mxu0 0
        %1970 = vmatpush1.bf16.msra.mxu0 %v1945
        %1971 = vmatprep.subr.bf16.mxu0 0
        %1972 = vmatpush1.bf16.msra.mxu0 %v1944
        %1973 = vmatprep.subr.bf16.mxu0 0
        %1974 = vmatpush1.bf16.msra.mxu0 %v1943
        %1975 = vmatprep.subr.bf16.mxu0 0
        %1976 = vmatpush2.bf16.msra.mxu0 0
        %1977 = vmatprep.subr.bf16.mxu0 0
        %1978 = vmatpush2.bf16.msra.mxu0 0
        %1979 = vmatprep.subr.bf16.mxu0 0
        %1980 = vmatpush2.bf16.msra.mxu0 0
        %1981 = vmatprep.subr.bf16.mxu0 0
        %1982 = vmatpush2.bf16.msra.mxu0 0
        %1983 = vmatprep.subr.bf16.mxu0 0
        %1984 = vmatpush2.bf16.msra.mxu0 0
        %1985 = vmatprep.subr.bf16.mxu0 0
        %1986 = vmatpush2.bf16.msra.mxu0 0
        %1987 = vmatprep.subr.bf16.mxu0 0
        %1988 = vmatpush2.bf16.msra.mxu0 0
        %1989 = vmatprep.subr.bf16.mxu0 0
        %1990 = vmatpush2.bf16.msra.mxu0 0
        %1991 = vmatprep.mubr.bf16.mxu0 0
        %1992 = vmatmul.mubr.bf16.gmra.mxu0 %v1893
        %v1993 = vpop.f32.mrf.mxu0
        %v1994 = vadd.f32 0.0, %v1993
        %v1995 = vpop.f32.mrf.mxu0
        %v1996 = vpop.f32.mrf.mxu0
        %v1997 = vadd.f32 0.0, %v1996
        %v1998 = vpop.f32.mrf.mxu0
        %1999 = vdwg.mxu0
        %v2000 = vadd.f32 %v1839, %v1994
        %v2001 = vadd.f32 %v1840, %v1997
        %v2002 = vld [vmem:[%s7] sm:$0x1]
        %v2003 = vlaneseq
        %v2004 = vshrl.u32 %v2003, 7
        %v2005 = vsub.s32 0, %v2004
        %v2006 = vrot.slane %v2002, %v2005
        %v2007 = vmul.f32 %v2000, %v2006
        %v2008 = vmul.f32 %v2001, %v2006
        %v2009 = vld [vmem:[%s7 + $0x1] sm:$0x1]
        %v2010 = vlaneseq
        %v2011 = vshrl.u32 %v2010, 7
        %v2012 = vsub.s32 0, %v2011
        %v2013 = vrot.slane %v2009, %v2012
        %v2014 = vadd.f32 %v2007, %v2013
        %v2015 = vadd.f32 %v2008, %v2013
        %v2016 = vpack.c.bf16 %v2015, %v2014
        %v2017 = vld [vmem:[%s4] sm:$0xf]
        %v2018 = vld [vmem:[%s4 + $0x4] sm:$0xf]
        %v2019 = vld [vmem:[%s4 + $0x8] sm:$0xf]
        %v2020 = vld [vmem:[%s4 + $0xc] sm:$0xf]
        %v2021 = vld [vmem:[%s4 + $0x10] sm:$0xf]
        %v2022 = vld [vmem:[%s4 + $0x14] sm:$0xf]
        %v2023 = vld [vmem:[%s4 + $0x18] sm:$0xf]
        %v2024 = vld [vmem:[%s4 + $0x1c] sm:$0xf]
        %v2025 = vld [vmem:[%s4 + $0x20] sm:$0xf]
        %v2026 = vld [vmem:[%s4 + $0x24] sm:$0xf]
        %v2027 = vld [vmem:[%s4 + $0x28] sm:$0xf]
        %v2028 = vld [vmem:[%s4 + $0x2c] sm:$0xf]
        %v2029 = vld [vmem:[%s4 + $0x30] sm:$0xf]
        %v2030 = vld [vmem:[%s4 + $0x34] sm:$0xf]
        %v2031 = vld [vmem:[%s4 + $0x38] sm:$0xf]
        %v2032 = vld [vmem:[%s4 + $0x3c] sm:$0xf]
        %v2033 = vld [vmem:[%s8] sm:$0x1]
        %v2035 = vlaneseq
        %v2036 = vshrl.u32 %v2035, 7
        %v2037 = vsub.s32 0, %v2036
        %v2038 = vrot.slane %v2033, %v2037
        %v2056 = vunpack.c.l.b16 %v2017
        %v2057 = vunpack.c.l.b16 %v2018
        %v2058 = vunpack.c.l.b16 %v2019
        %v2059 = vunpack.c.l.b16 %v2020
        %v2060 = vunpack.c.l.b16 %v2021
        %v2061 = vunpack.c.l.b16 %v2022
        %v2062 = vunpack.c.l.b16 %v2023
        %v2063 = vunpack.c.l.b16 %v2024
        %v2064 = vunpack.c.l.b16 %v2025
        %v2065 = vunpack.c.l.b16 %v2026
        %v2066 = vunpack.c.l.b16 %v2027
        %v2067 = vunpack.c.l.b16 %v2028
        %v2068 = vunpack.c.l.b16 %v2029
        %v2069 = vunpack.c.l.b16 %v2030
        %v2070 = vunpack.c.l.b16 %v2031
        %v2071 = vunpack.c.l.b16 %v2032
        %v2072 = vpack.c.b16 %v2057, %v2056
        %v2073 = vpack.c.b16 %v2059, %v2058
        %v2074 = vpack.c.b16 %v2061, %v2060
        %v2075 = vpack.c.b16 %v2063, %v2062
        %v2076 = vpack.c.b16 %v2065, %v2064
        %v2077 = vpack.c.b16 %v2067, %v2066
        %v2078 = vpack.c.b16 %v2069, %v2068
        %v2079 = vpack.c.b16 %v2071, %v2070
        %2088 = vmatprep.subr.bf16.mxu0 0
        %2089 = vmatpush1.bf16.msra.mxu0 %v2079
        %2090 = vmatprep.subr.bf16.mxu0 0
        %2091 = vmatpush1.bf16.msra.mxu0 %v2078
        %2092 = vmatprep.subr.bf16.mxu0 0
        %2093 = vmatpush1.bf16.msra.mxu0 %v2077
        %2094 = vmatprep.subr.bf16.mxu0 0
        %2095 = vmatpush1.bf16.msra.mxu0 %v2076
        %2096 = vmatprep.subr.bf16.mxu0 0
        %2097 = vmatpush1.bf16.msra.mxu0 %v2075
        %2098 = vmatprep.subr.bf16.mxu0 0
        %2099 = vmatpush1.bf16.msra.mxu0 %v2074
        %2100 = vmatprep.subr.bf16.mxu0 0
        %2101 = vmatpush1.bf16.msra.mxu0 %v2073
        %2102 = vmatprep.subr.bf16.mxu0 0
        %2103 = vmatpush1.bf16.msra.mxu0 %v2072
        %2104 = vmatprep.subr.bf16.mxu0 0
        %2105 = vmatpush2.bf16.msra.mxu0 0
        %2106 = vmatprep.subr.bf16.mxu0 0
        %2107 = vmatpush2.bf16.msra.mxu0 0
        %2108 = vmatprep.subr.bf16.mxu0 0
        %2109 = vmatpush2.bf16.msra.mxu0 0
        %2110 = vmatprep.subr.bf16.mxu0 0
        %2111 = vmatpush2.bf16.msra.mxu0 0
        %2112 = vmatprep.subr.bf16.mxu0 0
        %2113 = vmatpush2.bf16.msra.mxu0 0
        %2114 = vmatprep.subr.bf16.mxu0 0
        %2115 = vmatpush2.bf16.msra.mxu0 0
        %2116 = vmatprep.subr.bf16.mxu0 0
        %2117 = vmatpush2.bf16.msra.mxu0 0
        %2118 = vmatprep.subr.bf16.mxu0 0
        %2119 = vmatpush2.bf16.msra.mxu0 0
        %2120 = vmatprep.mubr.bf16.mxu0 0
        %2121 = vmatmul.mubr.bf16.gmra.mxu0 %v2016
        %v2122 = vpop.f32.mrf.mxu0
        %v2123 = vadd.f32 %v2038, %v2122
        %v2124 = vpop.f32.mrf.mxu0
        %v2125 = vpop.f32.mrf.mxu0
        %v2126 = vadd.f32 %v2038, %v2125
        %v2127 = vpop.f32.mrf.mxu0
        %2128 = vdwg.mxu0
        %v2129 = vmax.f32 %v2123, 0.0
        %v2130 = vmax.f32 %v2126, 0.0
        %v2131 = vpack.c.bf16 %v2130, %v2129
        %v2132 = vld [vmem:[%s5] sm:$0xf]
        %v2133 = vld [vmem:[%s5 + $0x4] sm:$0xf]
        %v2134 = vld [vmem:[%s5 + $0x8] sm:$0xf]
        %v2135 = vld [vmem:[%s5 + $0xc] sm:$0xf]
        %v2136 = vld [vmem:[%s5 + $0x10] sm:$0xf]
        %v2137 = vld [vmem:[%s5 + $0x14] sm:$0xf]
        %v2138 = vld [vmem:[%s5 + $0x18] sm:$0xf]
        %v2139 = vld [vmem:[%s5 + $0x1c] sm:$0xf]
        %v2140 = vld [vmem:[%s5 + $0x20] sm:$0xf]
        %v2141 = vld [vmem:[%s5 + $0x24] sm:$0xf]
        %v2142 = vld [vmem:[%s5 + $0x28] sm:$0xf]
        %v2143 = vld [vmem:[%s5 + $0x2c] sm:$0xf]
        %v2144 = vld [vmem:[%s5 + $0x30] sm:$0xf]
        %v2145 = vld [vmem:[%s5 + $0x34] sm:$0xf]
        %v2146 = vld [vmem:[%s5 + $0x38] sm:$0xf]
        %v2147 = vld [vmem:[%s5 + $0x3c] sm:$0xf]
        %v2148 = vld [vmem:[%s9] sm:$0x1]
        %v2150 = vlaneseq
        %v2151 = vshrl.u32 %v2150, 7
        %v2152 = vsub.s32 0, %v2151
        %v2153 = vrot.slane %v2148, %v2152
        %v2171 = vunpack.c.l.b16 %v2132
        %v2172 = vunpack.c.l.b16 %v2133
        %v2173 = vunpack.c.l.b16 %v2134
        %v2174 = vunpack.c.l.b16 %v2135
        %v2175 = vunpack.c.l.b16 %v2136
        %v2176 = vunpack.c.l.b16 %v2137
        %v2177 = vunpack.c.l.b16 %v2138
        %v2178 = vunpack.c.l.b16 %v2139
        %v2179 = vunpack.c.l.b16 %v2140
        %v2180 = vunpack.c.l.b16 %v2141
        %v2181 = vunpack.c.l.b16 %v2142
        %v2182 = vunpack.c.l.b16 %v2143
        %v2183 = vunpack.c.l.b16 %v2144
        %v2184 = vunpack.c.l.b16 %v2145
        %v2185 = vunpack.c.l.b16 %v2146
        %v2186 = vunpack.c.l.b16 %v2147
        %v2187 = vpack.c.b16 %v2172, %v2171
        %v2188 = vpack.c.b16 %v2174, %v2173
        %v2189 = vpack.c.b16 %v2176, %v2175
        %v2190 = vpack.c.b16 %v2178, %v2177
        %v2191 = vpack.c.b16 %v2180, %v2179
        %v2192 = vpack.c.b16 %v2182, %v2181
        %v2193 = vpack.c.b16 %v2184, %v2183
        %v2194 = vpack.c.b16 %v2186, %v2185
        %2203 = vmatprep.subr.bf16.mxu0 0
        %2204 = vmatpush1.bf16.msra.mxu0 %v2194
        %2205 = vmatprep.subr.bf16.mxu0 0
        %2206 = vmatpush1.bf16.msra.mxu0 %v2193
        %2207 = vmatprep.subr.bf16.mxu0 0
        %2208 = vmatpush1.bf16.msra.mxu0 %v2192
        %2209 = vmatprep.subr.bf16.mxu0 0
        %2210 = vmatpush1.bf16.msra.mxu0 %v2191
        %2211 = vmatprep.subr.bf16.mxu0 0
        %2212 = vmatpush1.bf16.msra.mxu0 %v2190
        %2213 = vmatprep.subr.bf16.mxu0 0
        %2214 = vmatpush1.bf16.msra.mxu0 %v2189
        %2215 = vmatprep.subr.bf16.mxu0 0
        %2216 = vmatpush1.bf16.msra.mxu0 %v2188
        %2217 = vmatprep.subr.bf16.mxu0 0
        %2218 = vmatpush1.bf16.msra.mxu0 %v2187
        %2219 = vmatprep.subr.bf16.mxu0 0
        %2220 = vmatpush2.bf16.msra.mxu0 0
        %2221 = vmatprep.subr.bf16.mxu0 0
        %2222 = vmatpush2.bf16.msra.mxu0 0
        %2223 = vmatprep.subr.bf16.mxu0 0
        %2224 = vmatpush2.bf16.msra.mxu0 0
        %2225 = vmatprep.subr.bf16.mxu0 0
        %2226 = vmatpush2.bf16.msra.mxu0 0
        %2227 = vmatprep.subr.bf16.mxu0 0
        %2228 = vmatpush2.bf16.msra.mxu0 0
        %2229 = vmatprep.subr.bf16.mxu0 0
        %2230 = vmatpush2.bf16.msra.mxu0 0
        %2231 = vmatprep.subr.bf16.mxu0 0
        %2232 = vmatpush2.bf16.msra.mxu0 0
        %2233 = vmatprep.subr.bf16.mxu0 0
        %2234 = vmatpush2.bf16.msra.mxu0 0
        %2235 = vmatprep.mubr.bf16.mxu0 0
        %2236 = vmatmul.mubr.bf16.gmra.mxu0 %v2131
        %v2237 = vpop.f32.mrf.mxu0
        %v2238 = vadd.f32 %v2153, %v2237
        %v2239 = vpop.f32.mrf.mxu0
        %v2240 = vpop.f32.mrf.mxu0
        %v2241 = vadd.f32 %v2153, %v2240
        %v2242 = vpop.f32.mrf.mxu0
        %2243 = vdwg.mxu0
        %2244 = vst [vmem:[%s352] sm:$0xff] %v2238
        %2245 = vst [vmem:[%s352 + $0x8] sm:$0xff] %v2241
        %s2246 = sand.u32 %s247, 1
        %s2247 = scalar_lea.sflag [#allocation3], %s2246
        %s2248 = sand.u32 %s247, 1
        %s2249 = smul.addr %s2248, 16
        %s2250 = scalar_lea.vmem [#allocation2], %s2249
        // Predicated region
        $region61: #{conv_embedding_forward.1} parent=59 // pred_check
          %p2251 = pneg %p257
        $region62: #{conv_embedding_forward.1} parent=59 // pred_check_branch
          %2253 = sbr.rel (%p2251) target = $region64
        $region63: #{conv_embedding_forward.1} parent=59 // pred_region
          %s2255 = ssub.s32 256, 256
          %2256 = vsyncadd %s2247, %s2255
          %s2257 = smul.addr %s24, 2
          %s2258 = smul.addr %s2257, 128
          %s2259 = scalar_lea.hbm %s10, %s2258
          %s2260 = sshll.u32 %s2250, 4
          %s2261 = int_to_ptr.vmem [resolvable:$true] %s2260
          %2266 = dma.vmem_to_hbm [thread:$0]  %s2261, 256, %s2259, %s2247, 128, 128, 8
        $region64: #{conv_embedding_forward.1} parent=59 // pred_fallthru
          _
      $region60: #{conv_embedding_forward.1} parent=5 // pred_fallthru
        _
      %p2267 = scmp.le.s32.totalorder 2, %s19
      // Predicated region
      $region65: #{conv_embedding_forward.1} parent=5 // pred_check
        %p2268 = pneg %p2267
      $region66: #{conv_embedding_forward.1} parent=5 // pred_check_branch
        %2270 = sbr.rel (%p2268) target = $region68
      $region67: #{conv_embedding_forward.1} parent=5 // pred_region
        %s2271 = ssub.s32 %s19, 2
        // Predicated region
        $region69: #{conv_embedding_forward.1} parent=67 // pred_check
          %p2272 = pneg %p263
        $region70: #{conv_embedding_forward.1} parent=67 // pred_check_branch
          %2274 = sbr.rel (%p2272) target = $region72
        $region71: #{conv_embedding_forward.1} parent=67 // pred_region
          %s2275 = sand.u32 %s248, 1
          %s2276 = scalar_lea.sflag [#allocation3], %s2275
          %s2277 = sand.u32 %s248, 1
          %s2278 = smul.addr %s2277, 16
          %s2279 = scalar_lea.vmem [#allocation2], %s2278
          %2280 = dma.done %s2276, 256
        $region72: #{conv_embedding_forward.1} parent=67 // pred_fallthru
          _
      $region68: #{conv_embedding_forward.1} parent=5 // pred_fallthru
        _
    $region6: #{conv_embedding_forward.1} parent=1 // loop_footer
      %s23 = sadd.s32 1, %s19
    $region7: #{conv_embedding_forward.1} parent=1 // loop_footer_branch
      %18 = sbr.rel target = $region3
    $region8: #{conv_embedding_forward.1} parent=1 // loop_exit
      _
    %2281 = vsyncpa [#allocation3], 1
    %s2282 = scalar_lea.sflag [#allocation3], 1
    %2283 = vsyncpa %s2282, 1

</llo_original>
